<compile_context>
chip_gen: v7x
topology: tpu7x:2x2x1
jax: 0.10.0
libtpu: 0.0.40
codegen_flags: <defaults>
</compile_context>

<pallas_src>
import functools

import jax
import jax.numpy as jnp
from jax.experimental import pallas as pl
from jax.experimental.pallas import tpu as pltpu

_EPS = 1e-5  # torch.nn.LayerNorm default


# --------------------------------------------------------------------------- #
# Tiling helper
# --------------------------------------------------------------------------- #
def _pick_rows_per_block(n_rows, target=512):
    """Pick a large row tile (amortize per-grid-step overhead), preferring exact
    divisors of n_rows so no ragged tail is needed.  512 rows of f32 at
    dim<=4096 stays within the 16/32 MiB scoped-VMEM budgets of v5e/v7x even
    with double buffering."""
    if n_rows <= target:
        return n_rows
    for cand in range(target, 7, -8):
        if n_rows % cand == 0:
            return cand
    return target  # ragged last block: Pallas masks OOB stores


# --------------------------------------------------------------------------- #
# Kernel 1: fused LayerNorm + matmul (+ bias)
# --------------------------------------------------------------------------- #
def _prenorm_matmul_kernel(x_ref, g_ref, b_ref, w_ref, bias_ref, o_ref):
    x = x_ref[...].astype(jnp.float32)                       # (tm, dim)
    mean = jnp.mean(x, axis=-1, keepdims=True)
    cen = x - mean
    var = jnp.mean(cen * cen, axis=-1, keepdims=True)        # biased, like torch
    y = cen * jax.lax.rsqrt(var + _EPS)
    y = y * g_ref[...] + b_ref[...]                          # gamma/beta already f32
    out = jnp.dot(y, w_ref[...].astype(jnp.float32),
                  preferred_element_type=jnp.float32)        # MXU
    out = out + bias_ref[...]
    o_ref[...] = out.astype(o_ref.dtype)


def prenorm_matmul(x, gamma, beta, w, bias=None, *, rows_per_block=None):
    """act = LayerNorm(x) @ w (+ bias).  x: (..., dim), w: (dim, n_out)."""
    *lead, dim = x.shape
    n_out = w.shape[1]
    x2 = x.reshape(-1, dim)
    rows = x2.shape[0]
    tm = rows_per_block or _pick_rows_per_block(rows)

    g2 = gamma.reshape(1, dim).astype(jnp.float32)
    b2 = beta.reshape(1, dim).astype(jnp.float32)
    bias2 = (jnp.zeros((1, n_out), jnp.float32) if bias is None
             else bias.reshape(1, n_out).astype(jnp.float32))

    out = pl.pallas_call(
        _prenorm_matmul_kernel,
        out_shape=jax.ShapeDtypeStruct((rows, n_out), x.dtype),
        grid=(pl.cdiv(rows, tm),),
        in_specs=[
            pl.BlockSpec((tm, dim), lambda i: (i, 0)),
            pl.BlockSpec((1, dim), lambda i: (0, 0)),     # resident (constant index)
            pl.BlockSpec((1, dim), lambda i: (0, 0)),
            pl.BlockSpec((dim, n_out), lambda i: (0, 0)),
            pl.BlockSpec((1, n_out), lambda i: (0, 0)),
        ],
        out_specs=pl.BlockSpec((tm, n_out), lambda i: (i, 0)),
        compiler_params=pltpu.CompilerParams(dimension_semantics=("parallel",)),
    )(x2, g2, b2, w, bias2)
    return out.reshape(*lead, n_out)


# --------------------------------------------------------------------------- #
# Kernel 2: attention core, one (batch*head) slice per grid step
# --------------------------------------------------------------------------- #
def _attention_kernel(q_ref, k_ref, v_ref, o_ref, *, scale):
    q = q_ref[...].astype(jnp.float32)                        # (n, d)
    k = k_ref[...].astype(jnp.float32)
    v = v_ref[...].astype(jnp.float32)
    # scores = q @ k^T * scale   (contract on d without materializing k^T)
    s = jax.lax.dot_general(q, k, (((1,), (1,)), ((), ())),
                            preferred_element_type=jnp.float32) * scale
    s_max = jnp.max(s, axis=-1, keepdims=True)
    p = jnp.exp(s - s_max)
    p = p / jnp.sum(p, axis=-1, keepdims=True)
    o = jnp.dot(p, v, preferred_element_type=jnp.float32)
    o_ref[...] = o.astype(o_ref.dtype)


def attention_core(q, k, v, scale):
    """q, k, v: (batch*heads, n, d) -> (batch*heads, n, d)."""
    bh, n, d = q.shape
    spec = pl.BlockSpec((None, n, d), lambda i: (i, 0, 0))    # leading dim squeezed
    return pl.pallas_call(
        functools.partial(_attention_kernel, scale=scale),
        out_shape=jax.ShapeDtypeStruct((bh, n, d), q.dtype),
        grid=(bh,),
        in_specs=[spec, spec, spec],
        out_specs=spec,
        compiler_params=pltpu.CompilerParams(dimension_semantics=("parallel",)),
    )(q, k, v)


# --------------------------------------------------------------------------- #
# Kernel 3: matmul + bias + residual add
# --------------------------------------------------------------------------- #
def _matmul_bias_residual_kernel(x_ref, w_ref, b_ref, r_ref, o_ref):
    x = x_ref[...].astype(jnp.float32)
    out = jnp.dot(x, w_ref[...].astype(jnp.float32),
                  preferred_element_type=jnp.float32)
    out = out + b_ref[...] + r_ref[...].astype(jnp.float32)
    o_ref[...] = out.astype(o_ref.dtype)


def matmul_bias_residual(x, w, bias, residual, *, rows_per_block=None):
    """out = x @ w + bias + residual.  x: (..., k), w: (k, n_out)."""
    *lead, k_dim = x.shape
    n_out = w.shape[1]
    x2 = x.reshape(-1, k_dim)
    r2 = residual.reshape(-1, n_out)
    rows = x2.shape[0]
    tm = rows_per_block or _pick_rows_per_block(rows)
    bias2 = bias.reshape(1, n_out).astype(jnp.float32)

    out = pl.pallas_call(
        _matmul_bias_residual_kernel,
        out_shape=jax.ShapeDtypeStruct((rows, n_out), x.dtype),
        grid=(pl.cdiv(rows, tm),),
        in_specs=[
            pl.BlockSpec((tm, k_dim), lambda i: (i, 0)),
            pl.BlockSpec((k_dim, n_out), lambda i: (0, 0)),
            pl.BlockSpec((1, n_out), lambda i: (0, 0)),
            pl.BlockSpec((tm, n_out), lambda i: (i, 0)),
        ],
        out_specs=pl.BlockSpec((tm, n_out), lambda i: (i, 0)),
        compiler_params=pltpu.CompilerParams(dimension_semantics=("parallel",)),
    )(x2, w, bias2, r2)
    return out.reshape(*lead, n_out)


# --------------------------------------------------------------------------- #
# Transformer forward (Pallas)
# --------------------------------------------------------------------------- #
def attention_block(x, p, heads, dim_head):
    """Residual(PreNorm(Attention)) — mask=None path."""
    b, n, _ = x.shape
    inner = heads * dim_head
    # Fused PreNorm + QKV projection (to_qkv has no bias).
    qkv = prenorm_matmul(x, p["ln_g"], p["ln_b"], p["w_qkv"], bias=None)
    q, k, v = jnp.split(qkv, 3, axis=-1)

    def split_heads(t):  # 'b n (h d) -> (b h) n d'
        return t.reshape(b, n, heads, dim_head).transpose(0, 2, 1, 3).reshape(
            b * heads, n, dim_head)

    q, k, v = (split_heads(t) for t in (q, k, v))
    # TODO(synk): optional attention-mask path (masked_fill before softmax).
    o = attention_core(q, k, v, dim_head ** -0.5)
    o = o.reshape(b, heads, n, dim_head).transpose(0, 2, 1, 3).reshape(b, n, inner)
    # to_out (Linear + Dropout(p=0)) fused with the residual add.
    return matmul_bias_residual(o, p["w_out"], p["b_out"], x)


def ffn_block(x, p):
    """Residual(PreNorm(FeedForward))."""
    h_pre = prenorm_matmul(x, p["ln_g"], p["ln_b"], p["w1"], bias=p["b1"])
    h = jax.nn.gelu(h_pre, approximate=False)   # exact erf GELU, matches torch nn.GELU()
    return matmul_bias_residual(h, p["w2"], p["b2"], x)


def transformer_forward(x, params, *, heads, dim_head):
    b, n, dim = x.shape
    cls = jnp.broadcast_to(params["cls_token"], (b, 1, dim)).astype(x.dtype)
    h = jnp.concatenate([cls, x], axis=1) + params["pos_embedding"][:, : n + 1]
    # emb dropout: identity (p=0 / eval)
    for layer in params["layers"]:
        h = attention_block(h, layer["attn"], heads, dim_head)
        h = ffn_block(h, layer["ff"])
    return h[:, 1:, :]


# --------------------------------------------------------------------------- #
# Pure-JAX reference (mirrors the torch module exactly)
# --------------------------------------------------------------------------- #
def _layernorm_ref(x, g, b):
    mean = jnp.mean(x, axis=-1, keepdims=True)
    var = jnp.mean((x - mean) ** 2, axis=-1, keepdims=True)
    return (x - mean) / jnp.sqrt(var + _EPS) * g + b


def _attention_ref(x, p, heads, dim_head):
    b, n, _ = x.shape
    y = _layernorm_ref(x, p["ln_g"], p["ln_b"])
    q, k, v = jnp.split(y @ p["w_qkv"], 3, axis=-1)
    hsplit = lambda t: t.reshape(b, n, heads, dim_head).transpose(0, 2, 1, 3)
    q, k, v = map(hsplit, (q, k, v))
    dots = jnp.einsum("bhid,bhjd->bhij", q, k) * (dim_head ** -0.5)
    attn = jax.nn.softmax(dots, axis=-1)
    o = jnp.einsum("bhij,bhjd->bhid", attn, v)
    o = o.transpose(0, 2, 1, 3).reshape(b, n, heads * dim_head)
    return o @ p["w_out"] + p["b_out"] + x


def _ffn_ref(x, p):
    y = _layernorm_ref(x, p["ln_g"], p["ln_b"])
    h = jax.nn.gelu(y @ p["w1"] + p["b1"], approximate=False)
    return h @ p["w2"] + p["b2"] + x


def transformer_ref(x, params, *, heads, dim_head):
    b, n, dim = x.shape
    cls = jnp.broadcast_to(params["cls_token"], (b, 1, dim))
    h = jnp.concatenate([cls, x], axis=1) + params["pos_embedding"][:, : n + 1]
    for layer in params["layers"]:
        h = _attention_ref(h, layer["attn"], heads, dim_head)
        h = _ffn_ref(h, layer["ff"])
    return h[:, 1:, :]


# --------------------------------------------------------------------------- #
# Deterministic parameter construction
# --------------------------------------------------------------------------- #
def init_params(key, *, seq_len, dim, depth, heads, dim_head, mlp_dim):
    inner = heads * dim_head
    keys = iter(jax.random.split(key, 2 + depth * 7))
    nk = lambda: next(keys)
    ramp = jnp.arange(dim, dtype=jnp.float32) / dim
    params = {
        "pos_embedding": jax.random.normal(nk(), (1, seq_len + 1, dim), jnp.float32),
        "cls_token": jax.random.uniform(nk(), (1, 1, dim), jnp.float32),
        "layers": [],
    }
    for _ in range(depth):
        attn = {
            "ln_g": 1.0 + 0.1 * ramp,      # non-trivial affine to exercise the path
            "ln_b": 0.01 * ramp,
            "w_qkv": 0.02 * jax.random.normal(nk(), (dim, inner * 3), jnp.float32),
            "w_out": 0.02 * jax.random.normal(nk(), (inner, dim), jnp.float32),
            "b_out": 0.02 * jax.random.normal(nk(), (dim,), jnp.float32),
        }
        ff = {
            "ln_g": 1.0 - 0.05 * ramp,
            "ln_b": -0.02 * ramp,
            "w1": 0.02 * jax.random.normal(nk(), (dim, mlp_dim), jnp.float32),
            "b1": 0.02 * jax.random.normal(nk(), (mlp_dim,), jnp.float32),
            "w2": 0.02 * jax.random.normal(nk(), (mlp_dim, dim), jnp.float32),
            "b2": 0.02 * jax.random.normal(nk(), (dim,), jnp.float32),
        }
        params["layers"].append({"attn": attn, "ff": ff})
    return params


if __name__ == "__main__":
    key = jax.random.PRNGKey(0)
    # Small shapes: seq_len=7 -> 8 tokens with the cls token, dim=32,
    # 2 layers, 2 heads of 16, mlp_dim=64.
    batch, seq_len, dim, depth, heads, dim_head, mlp_dim = 2, 7, 32, 2, 2, 16, 64

    k_par, k_x = jax.random.split(key)
    params = init_params(k_par, seq_len=seq_len, dim=dim, depth=depth,
                         heads=heads, dim_head=dim_head, mlp_dim=mlp_dim)
    x = jax.random.normal(k_x, (batch, seq_len, dim), dtype=jnp.float32)

    fwd = jax.jit(functools.partial(transformer_forward, heads=heads, dim_head=dim_head))
    out = fwd(x, params)
    out = jax.block_until_ready(out)
    assert out.shape == (batch, seq_len, dim)

    ref = transformer_ref(x, params, heads=heads, dim_head=dim_head)
    ref = jax.block_until_ready(ref)
    assert jnp.allclose(out, ref, atol=2e-3, rtol=2e-3), (
        "mismatch vs reference: max abs diff "
        f"{float(jnp.max(jnp.abs(out - ref)))}")

    print("KERNEL_OK")
</pallas_src>

<mosaic_0001>
module attributes {stable_mosaic.version = 11 : i64} {
  func.func @_matmul_bias_residual_kernel(%arg0: i32, %arg1: memref<16x32xf32, #tpu.memory_space<vmem>>, %arg2: memref<32x32xf32, #tpu.memory_space<vmem>>, %arg3: memref<1x32xf32, #tpu.memory_space<vmem>>, %arg4: memref<16x32xf32, #tpu.memory_space<vmem>>, %arg5: memref<16x32xf32, #tpu.memory_space<vmem>>) attributes {dimension_semantics = [#tpu.dimension_semantics<parallel>], iteration_bounds = array<i64: 1>, scalar_prefetch = 0 : i64, scratch_operands = 0 : i64, tpu.core_type = #tpu.core_type<tc>, window_params = [{transform_indices = @transform_0, window_bounds = array<i64: 16, 32>}, {pipeline_mode = #tpu.pipeline_mode<synchronous>, transform_indices = @transform_1, window_bounds = array<i64: 32, 32>}, {pipeline_mode = #tpu.pipeline_mode<synchronous>, transform_indices = @transform_2, window_bounds = array<i64: 1, 32>}, {transform_indices = @transform_3, window_bounds = array<i64: 16, 32>}, {transform_indices = @transform_4, window_bounds = array<i64: 16, 32>}]} {
    %c0 = arith.constant 0 : index
    %c0_0 = arith.constant 0 : index
    %0 = vector.load %arg1[%c0, %c0_0] : memref<16x32xf32, #tpu.memory_space<vmem>>, vector<16x32xf32>
    %c0_1 = arith.constant 0 : index
    %c0_2 = arith.constant 0 : index
    %1 = vector.load %arg2[%c0_1, %c0_2] : memref<32x32xf32, #tpu.memory_space<vmem>>, vector<32x32xf32>
    %cst = arith.constant dense<0.000000e+00> : vector<16x32xf32>
    %2 = tpu.matmul %0, %1, %cst {dimension_numbers = #tpu.dot_dimension_numbers<[1], [0], [0], [1], [0, 0, 1, 1], [], []>} : vector<16x32xf32>, vector<32x32xf32>, vector<16x32xf32> -> vector<16x32xf32>
    %c0_3 = arith.constant 0 : index
    %c0_4 = arith.constant 0 : index
    %3 = vector.load %arg3[%c0_3, %c0_4] : memref<1x32xf32, #tpu.memory_space<vmem>>, vector<1x32xf32>
    %4 = vector.broadcast %3 : vector<1x32xf32> to vector<16x32xf32>
    %5 = arith.addf %2, %4 : vector<16x32xf32>
    %c0_5 = arith.constant 0 : index
    %c0_6 = arith.constant 0 : index
    %6 = vector.load %arg4[%c0_5, %c0_6] : memref<16x32xf32, #tpu.memory_space<vmem>>, vector<16x32xf32>
    %7 = arith.addf %5, %6 : vector<16x32xf32>
    %c0_7 = arith.constant 0 : index
    %c0_8 = arith.constant 0 : index
    %8 = vector.load %arg5[%c0_7, %c0_8] : memref<16x32xf32, #tpu.memory_space<vmem>>, vector<16x32xf32>
    tpu.vector_store %arg5[%c0_7, %c0_8], %7 {strides = array<i32>} : memref<16x32xf32, #tpu.memory_space<vmem>>, vector<16x32xf32>,
    return
  }
  func.func @transform_0(%arg0: i32) -> (i32, i32) {
    %c0_i32 = arith.constant 0 : i32
    %c0_i32_0 = arith.constant 0 : i32
    return %arg0, %c0_i32 : i32, i32
  }
  func.func @transform_1(%arg0: i32) -> (i32, i32) {
    %c0_i32 = arith.constant 0 : i32
    %c0_i32_0 = arith.constant 0 : i32
    %c0_i32_1 = arith.constant 0 : i32
    return %c0_i32, %c0_i32_0 : i32, i32
  }
  func.func @transform_2(%arg0: i32) -> (i32, i32) {
    %c0_i32 = arith.constant 0 : i32
    %c0_i32_0 = arith.constant 0 : i32
    %c0_i32_1 = arith.constant 0 : i32
    return %c0_i32, %c0_i32_0 : i32, i32
  }
  func.func @transform_3(%arg0: i32) -> (i32, i32) {
    %c0_i32 = arith.constant 0 : i32
    %c0_i32_0 = arith.constant 0 : i32
    return %arg0, %c0_i32 : i32, i32
  }
  func.func @transform_4(%arg0: i32) -> (i32, i32) {
    %c0_i32 = arith.constant 0 : i32
    %c0_i32_0 = arith.constant 0 : i32
    return %arg0, %c0_i32 : i32, i32
  }
}

module attributes {stable_mosaic.version = 11 : i64} {
  func.func @_attention_kernel(%arg0: i32, %arg1: memref<1x8x16xf32, #tpu.memory_space<vmem>>, %arg2: memref<1x8x16xf32, #tpu.memory_space<vmem>>, %arg3: memref<1x8x16xf32, #tpu.memory_space<vmem>>, %arg4: memref<1x8x16xf32, #tpu.memory_space<vmem>>) attributes {dimension_semantics = [#tpu.dimension_semantics<parallel>], iteration_bounds = array<i64: 4>, scalar_prefetch = 0 : i64, scratch_operands = 0 : i64, tpu.core_type = #tpu.core_type<tc>, window_params = [{transform_indices = @transform_0, window_bounds = array<i64: 1, 8, 16>}, {transform_indices = @transform_1, window_bounds = array<i64: 1, 8, 16>}, {transform_indices = @transform_2, window_bounds = array<i64: 1, 8, 16>}, {transform_indices = @transform_3, window_bounds = array<i64: 1, 8, 16>}]} {
    %c0 = arith.constant 0 : index
    %c0_0 = arith.constant 0 : index
    %c0_1 = arith.constant 0 : index
    %0 = vector.load %arg1[%c0, %c0_0, %c0_1] : memref<1x8x16xf32, #tpu.memory_space<vmem>>, vector<1x8x16xf32>
    %1 = vector.shape_cast %0 : vector<1x8x16xf32> to vector<8x16xf32>
    %c0_2 = arith.constant 0 : index
    %c0_3 = arith.constant 0 : index
    %c0_4 = arith.constant 0 : index
    %2 = vector.load %arg2[%c0_2, %c0_3, %c0_4] : memref<1x8x16xf32, #tpu.memory_space<vmem>>, vector<1x8x16xf32>
    %3 = vector.shape_cast %2 : vector<1x8x16xf32> to vector<8x16xf32>
    %c0_5 = arith.constant 0 : index
    %c0_6 = arith.constant 0 : index
    %c0_7 = arith.constant 0 : index
    %4 = vector.load %arg3[%c0_5, %c0_6, %c0_7] : memref<1x8x16xf32, #tpu.memory_space<vmem>>, vector<1x8x16xf32>
    %5 = vector.shape_cast %4 : vector<1x8x16xf32> to vector<8x16xf32>
    %cst = arith.constant dense<0.000000e+00> : vector<8x8xf32>
    %6 = tpu.matmul %1, %3, %cst {dimension_numbers = #tpu.dot_dimension_numbers<[1], [1], [0], [0], [0, 0, 1, 0], [], []>} : vector<8x16xf32>, vector<8x16xf32>, vector<8x8xf32> -> vector<8x8xf32>
    %cst_8 = arith.constant 2.500000e-01 : f32
    %7 = vector.broadcast %cst_8 : f32 to vector<8x8xf32>
    %8 = arith.mulf %6, %7 : vector<8x8xf32>
    %cst_9 = arith.constant dense<0xFF800000> : vector<8xf32>
    %9 = vector.multi_reduction <maximumf>, %8, %cst_9 [1] : vector<8x8xf32> to vector<8xf32>
    %10 = vector.shape_cast %9 : vector<8xf32> to vector<8x1xf32>
    %11 = vector.broadcast %10 : vector<8x1xf32> to vector<8x8xf32>
    %12 = arith.subf %8, %11 : vector<8x8xf32>
    %13 = math.exp %12 : vector<8x8xf32>
    %cst_10 = arith.constant dense<0.000000e+00> : vector<8xf32>
    %14 = vector.multi_reduction <add>, %13, %cst_10 [1] : vector<8x8xf32> to vector<8xf32>
    %15 = vector.shape_cast %14 : vector<8xf32> to vector<8x1xf32>
    %16 = vector.broadcast %15 : vector<8x1xf32> to vector<8x8xf32>
    %17 = arith.divf %13, %16 : vector<8x8xf32>
    %cst_11 = arith.constant dense<0.000000e+00> : vector<8x16xf32>
    %18 = tpu.matmul %17, %5, %cst_11 {dimension_numbers = #tpu.dot_dimension_numbers<[1], [0], [0], [1], [0, 0, 1, 1], [], []>} : vector<8x8xf32>, vector<8x16xf32>, vector<8x16xf32> -> vector<8x16xf32>
    %c0_12 = arith.constant 0 : index
    %c0_13 = arith.constant 0 : index
    %c0_14 = arith.constant 0 : index
    %19 = vector.load %arg4[%c0_12, %c0_13, %c0_14] : memref<1x8x16xf32, #tpu.memory_space<vmem>>, vector<1x8x16xf32>
    %20 = vector.shape_cast %19 : vector<1x8x16xf32> to vector<8x16xf32>
    %21 = vector.shape_cast %18 : vector<8x16xf32> to vector<1x8x16xf32>
    tpu.vector_store %arg4[%c0_12, %c0_13, %c0_14], %21 {strides = array<i32>} : memref<1x8x16xf32, #tpu.memory_space<vmem>>, vector<1x8x16xf32>,
    return
  }
  func.func @transform_0(%arg0: i32) -> (i32, i32, i32) {
    %c0_i32 = arith.constant 0 : i32
    %c0_i32_0 = arith.constant 0 : i32
    %c0_i32_1 = arith.constant 0 : i32
    return %arg0, %c0_i32, %c0_i32_0 : i32, i32, i32
  }
  func.func @transform_1(%arg0: i32) -> (i32, i32, i32) {
    %c0_i32 = arith.constant 0 : i32
    %c0_i32_0 = arith.constant 0 : i32
    %c0_i32_1 = arith.constant 0 : i32
    return %arg0, %c0_i32, %c0_i32_0 : i32, i32, i32
  }
  func.func @transform_2(%arg0: i32) -> (i32, i32, i32) {
    %c0_i32 = arith.constant 0 : i32
    %c0_i32_0 = arith.constant 0 : i32
    %c0_i32_1 = arith.constant 0 : i32
    return %arg0, %c0_i32, %c0_i32_0 : i32, i32, i32
  }
  func.func @transform_3(%arg0: i32) -> (i32, i32, i32) {
    %c0_i32 = arith.constant 0 : i32
    %c0_i32_0 = arith.constant 0 : i32
    %c0_i32_1 = arith.constant 0 : i32
    return %arg0, %c0_i32, %c0_i32_0 : i32, i32, i32
  }
}

module attributes {stable_mosaic.version = 11 : i64} {
  func.func @_prenorm_matmul_kernel(%arg0: i32, %arg1: memref<16x32xf32, #tpu.memory_space<vmem>>, %arg2: memref<1x32xf32, #tpu.memory_space<vmem>>, %arg3: memref<1x32xf32, #tpu.memory_space<vmem>>, %arg4: memref<32x96xf32, #tpu.memory_space<vmem>>, %arg5: memref<1x96xf32, #tpu.memory_space<vmem>>, %arg6: memref<16x96xf32, #tpu.memory_space<vmem>>) attributes {dimension_semantics = [#tpu.dimension_semantics<parallel>], iteration_bounds = array<i64: 1>, scalar_prefetch = 0 : i64, scratch_operands = 0 : i64, tpu.core_type = #tpu.core_type<tc>, window_params = [{transform_indices = @transform_0, window_bounds = array<i64: 16, 32>}, {pipeline_mode = #tpu.pipeline_mode<synchronous>, transform_indices = @transform_1, window_bounds = array<i64: 1, 32>}, {pipeline_mode = #tpu.pipeline_mode<synchronous>, transform_indices = @transform_2, window_bounds = array<i64: 1, 32>}, {pipeline_mode = #tpu.pipeline_mode<synchronous>, transform_indices = @transform_3, window_bounds = array<i64: 32, 96>}, {pipeline_mode = #tpu.pipeline_mode<synchronous>, transform_indices = @transform_4, window_bounds = array<i64: 1, 96>}, {transform_indices = @transform_5, window_bounds = array<i64: 16, 96>}]} {
    %c0 = arith.constant 0 : index
    %c0_0 = arith.constant 0 : index
    %0 = vector.load %arg1[%c0, %c0_0] : memref<16x32xf32, #tpu.memory_space<vmem>>, vector<16x32xf32>
    %cst = arith.constant dense<0.000000e+00> : vector<16xf32>
    %1 = vector.multi_reduction <add>, %0, %cst [1] : vector<16x32xf32> to vector<16xf32>
    %2 = vector.shape_cast %1 : vector<16xf32> to vector<16x1xf32>
    %cst_1 = arith.constant 3.200000e+01 : f32
    %3 = vector.broadcast %cst_1 : f32 to vector<16x1xf32>
    %4 = arith.divf %2, %3 : vector<16x1xf32>
    %5 = vector.broadcast %4 : vector<16x1xf32> to vector<16x32xf32>
    %6 = arith.subf %0, %5 : vector<16x32xf32>
    %7 = arith.mulf %6, %6 : vector<16x32xf32>
    %cst_2 = arith.constant dense<0.000000e+00> : vector<16xf32>
    %8 = vector.multi_reduction <add>, %7, %cst_2 [1] : vector<16x32xf32> to vector<16xf32>
    %9 = vector.shape_cast %8 : vector<16xf32> to vector<16x1xf32>
    %cst_3 = arith.constant 3.200000e+01 : f32
    %10 = vector.broadcast %cst_3 : f32 to vector<16x1xf32>
    %11 = arith.divf %9, %10 : vector<16x1xf32>
    %cst_4 = arith.constant 9.99999974E-6 : f32
    %12 = vector.broadcast %cst_4 : f32 to vector<16x1xf32>
    %13 = arith.addf %11, %12 : vector<16x1xf32>
    %14 = math.rsqrt %13 : vector<16x1xf32>
    %15 = vector.broadcast %14 : vector<16x1xf32> to vector<16x32xf32>
    %16 = arith.mulf %6, %15 : vector<16x32xf32>
    %c0_5 = arith.constant 0 : index
    %c0_6 = arith.constant 0 : index
    %17 = vector.load %arg2[%c0_5, %c0_6] : memref<1x32xf32, #tpu.memory_space<vmem>>, vector<1x32xf32>
    %18 = vector.broadcast %17 : vector<1x32xf32> to vector<16x32xf32>
    %19 = arith.mulf %16, %18 : vector<16x32xf32>
    %c0_7 = arith.constant 0 : index
    %c0_8 = arith.constant 0 : index
    %20 = vector.load %arg3[%c0_7, %c0_8] : memref<1x32xf32, #tpu.memory_space<vmem>>, vector<1x32xf32>
    %21 = vector.broadcast %20 : vector<1x32xf32> to vector<16x32xf32>
    %22 = arith.addf %19, %21 : vector<16x32xf32>
    %c0_9 = arith.constant 0 : index
    %c0_10 = arith.constant 0 : index
    %23 = vector.load %arg4[%c0_9, %c0_10] : memref<32x96xf32, #tpu.memory_space<vmem>>, vector<32x96xf32>
    %cst_11 = arith.constant dense<0.000000e+00> : vector<16x96xf32>
    %24 = tpu.matmul %22, %23, %cst_11 {dimension_numbers = #tpu.dot_dimension_numbers<[1], [0], [0], [1], [0, 0, 1, 1], [], []>} : vector<16x32xf32>, vector<32x96xf32>, vector<16x96xf32> -> vector<16x96xf32>
    %c0_12 = arith.constant 0 : index
    %c0_13 = arith.constant 0 : index
    %25 = vector.load %arg5[%c0_12, %c0_13] : memref<1x96xf32, #tpu.memory_space<vmem>>, vector<1x96xf32>
    %26 = vector.broadcast %25 : vector<1x96xf32> to vector<16x96xf32>
    %27 = arith.addf %24, %26 : vector<16x96xf32>
    %c0_14 = arith.constant 0 : index
    %c0_15 = arith.constant 0 : index
    %28 = vector.load %arg6[%c0_14, %c0_15] : memref<16x96xf32, #tpu.memory_space<vmem>>, vector<16x96xf32>
    tpu.vector_store %arg6[%c0_14, %c0_15], %27 {strides = array<i32>} : memref<16x96xf32, #tpu.memory_space<vmem>>, vector<16x96xf32>,
    return
  }
  func.func @transform_0(%arg0: i32) -> (i32, i32) {
    %c0_i32 = arith.constant 0 : i32
    %c0_i32_0 = arith.constant 0 : i32
    return %arg0, %c0_i32 : i32, i32
  }
  func.func @transform_1(%arg0: i32) -> (i32, i32) {
    %c0_i32 = arith.constant 0 : i32
    %c0_i32_0 = arith.constant 0 : i32
    %c0_i32_1 = arith.constant 0 : i32
    return %c0_i32, %c0_i32_0 : i32, i32
  }
  func.func @transform_2(%arg0: i32) -> (i32, i32) {
    %c0_i32 = arith.constant 0 : i32
    %c0_i32_0 = arith.constant 0 : i32
    %c0_i32_1 = arith.constant 0 : i32
    return %c0_i32, %c0_i32_0 : i32, i32
  }
  func.func @transform_3(%arg0: i32) -> (i32, i32) {
    %c0_i32 = arith.constant 0 : i32
    %c0_i32_0 = arith.constant 0 : i32
    %c0_i32_1 = arith.constant 0 : i32
    return %c0_i32, %c0_i32_0 : i32, i32
  }
  func.func @transform_4(%arg0: i32) -> (i32, i32) {
    %c0_i32 = arith.constant 0 : i32
    %c0_i32_0 = arith.constant 0 : i32
    %c0_i32_1 = arith.constant 0 : i32
    return %c0_i32, %c0_i32_0 : i32, i32
  }
  func.func @transform_5(%arg0: i32) -> (i32, i32) {
    %c0_i32 = arith.constant 0 : i32
    %c0_i32_0 = arith.constant 0 : i32
    return %arg0, %c0_i32 : i32, i32
  }
}

module attributes {stable_mosaic.version = 11 : i64} {
  func.func @_prenorm_matmul_kernel(%arg0: i32, %arg1: memref<16x32xf32, #tpu.memory_space<vmem>>, %arg2: memref<1x32xf32, #tpu.memory_space<vmem>>, %arg3: memref<1x32xf32, #tpu.memory_space<vmem>>, %arg4: memref<32x64xf32, #tpu.memory_space<vmem>>, %arg5: memref<1x64xf32, #tpu.memory_space<vmem>>, %arg6: memref<16x64xf32, #tpu.memory_space<vmem>>) attributes {dimension_semantics = [#tpu.dimension_semantics<parallel>], iteration_bounds = array<i64: 1>, scalar_prefetch = 0 : i64, scratch_operands = 0 : i64, tpu.core_type = #tpu.core_type<tc>, window_params = [{transform_indices = @transform_0, window_bounds = array<i64: 16, 32>}, {pipeline_mode = #tpu.pipeline_mode<synchronous>, transform_indices = @transform_1, window_bounds = array<i64: 1, 32>}, {pipeline_mode = #tpu.pipeline_mode<synchronous>, transform_indices = @transform_2, window_bounds = array<i64: 1, 32>}, {pipeline_mode = #tpu.pipeline_mode<synchronous>, transform_indices = @transform_3, window_bounds = array<i64: 32, 64>}, {pipeline_mode = #tpu.pipeline_mode<synchronous>, transform_indices = @transform_4, window_bounds = array<i64: 1, 64>}, {transform_indices = @transform_5, window_bounds = array<i64: 16, 64>}]} {
    %c0 = arith.constant 0 : index
    %c0_0 = arith.constant 0 : index
    %0 = vector.load %arg1[%c0, %c0_0] : memref<16x32xf32, #tpu.memory_space<vmem>>, vector<16x32xf32>
    %cst = arith.constant dense<0.000000e+00> : vector<16xf32>
    %1 = vector.multi_reduction <add>, %0, %cst [1] : vector<16x32xf32> to vector<16xf32>
    %2 = vector.shape_cast %1 : vector<16xf32> to vector<16x1xf32>
    %cst_1 = arith.constant 3.200000e+01 : f32
    %3 = vector.broadcast %cst_1 : f32 to vector<16x1xf32>
    %4 = arith.divf %2, %3 : vector<16x1xf32>
    %5 = vector.broadcast %4 : vector<16x1xf32> to vector<16x32xf32>
    %6 = arith.subf %0, %5 : vector<16x32xf32>
    %7 = arith.mulf %6, %6 : vector<16x32xf32>
    %cst_2 = arith.constant dense<0.000000e+00> : vector<16xf32>
    %8 = vector.multi_reduction <add>, %7, %cst_2 [1] : vector<16x32xf32> to vector<16xf32>
    %9 = vector.shape_cast %8 : vector<16xf32> to vector<16x1xf32>
    %cst_3 = arith.constant 3.200000e+01 : f32
    %10 = vector.broadcast %cst_3 : f32 to vector<16x1xf32>
    %11 = arith.divf %9, %10 : vector<16x1xf32>
    %cst_4 = arith.constant 9.99999974E-6 : f32
    %12 = vector.broadcast %cst_4 : f32 to vector<16x1xf32>
    %13 = arith.addf %11, %12 : vector<16x1xf32>
    %14 = math.rsqrt %13 : vector<16x1xf32>
    %15 = vector.broadcast %14 : vector<16x1xf32> to vector<16x32xf32>
    %16 = arith.mulf %6, %15 : vector<16x32xf32>
    %c0_5 = arith.constant 0 : index
    %c0_6 = arith.constant 0 : index
    %17 = vector.load %arg2[%c0_5, %c0_6] : memref<1x32xf32, #tpu.memory_space<vmem>>, vector<1x32xf32>
    %18 = vector.broadcast %17 : vector<1x32xf32> to vector<16x32xf32>
    %19 = arith.mulf %16, %18 : vector<16x32xf32>
    %c0_7 = arith.constant 0 : index
    %c0_8 = arith.constant 0 : index
    %20 = vector.load %arg3[%c0_7, %c0_8] : memref<1x32xf32, #tpu.memory_space<vmem>>, vector<1x32xf32>
    %21 = vector.broadcast %20 : vector<1x32xf32> to vector<16x32xf32>
    %22 = arith.addf %19, %21 : vector<16x32xf32>
    %c0_9 = arith.constant 0 : index
    %c0_10 = arith.constant 0 : index
    %23 = vector.load %arg4[%c0_9, %c0_10] : memref<32x64xf32, #tpu.memory_space<vmem>>, vector<32x64xf32>
    %cst_11 = arith.constant dense<0.000000e+00> : vector<16x64xf32>
    %24 = tpu.matmul %22, %23, %cst_11 {dimension_numbers = #tpu.dot_dimension_numbers<[1], [0], [0], [1], [0, 0, 1, 1], [], []>} : vector<16x32xf32>, vector<32x64xf32>, vector<16x64xf32> -> vector<16x64xf32>
    %c0_12 = arith.constant 0 : index
    %c0_13 = arith.constant 0 : index
    %25 = vector.load %arg5[%c0_12, %c0_13] : memref<1x64xf32, #tpu.memory_space<vmem>>, vector<1x64xf32>
    %26 = vector.broadcast %25 : vector<1x64xf32> to vector<16x64xf32>
    %27 = arith.addf %24, %26 : vector<16x64xf32>
    %c0_14 = arith.constant 0 : index
    %c0_15 = arith.constant 0 : index
    %28 = vector.load %arg6[%c0_14, %c0_15] : memref<16x64xf32, #tpu.memory_space<vmem>>, vector<16x64xf32>
    tpu.vector_store %arg6[%c0_14, %c0_15], %27 {strides = array<i32>} : memref<16x64xf32, #tpu.memory_space<vmem>>, vector<16x64xf32>,
    return
  }
  func.func @transform_0(%arg0: i32) -> (i32, i32) {
    %c0_i32 = arith.constant 0 : i32
    %c0_i32_0 = arith.constant 0 : i32
    return %arg0, %c0_i32 : i32, i32
  }
  func.func @transform_1(%arg0: i32) -> (i32, i32) {
    %c0_i32 = arith.constant 0 : i32
    %c0_i32_0 = arith.constant 0 : i32
    %c0_i32_1 = arith.constant 0 : i32
    return %c0_i32, %c0_i32_0 : i32, i32
  }
  func.func @transform_2(%arg0: i32) -> (i32, i32) {
    %c0_i32 = arith.constant 0 : i32
    %c0_i32_0 = arith.constant 0 : i32
    %c0_i32_1 = arith.constant 0 : i32
    return %c0_i32, %c0_i32_0 : i32, i32
  }
  func.func @transform_3(%arg0: i32) -> (i32, i32) {
    %c0_i32 = arith.constant 0 : i32
    %c0_i32_0 = arith.constant 0 : i32
    %c0_i32_1 = arith.constant 0 : i32
    return %c0_i32, %c0_i32_0 : i32, i32
  }
  func.func @transform_4(%arg0: i32) -> (i32, i32) {
    %c0_i32 = arith.constant 0 : i32
    %c0_i32_0 = arith.constant 0 : i32
    %c0_i32_1 = arith.constant 0 : i32
    return %c0_i32, %c0_i32_0 : i32, i32
  }
  func.func @transform_5(%arg0: i32) -> (i32, i32) {
    %c0_i32 = arith.constant 0 : i32
    %c0_i32_0 = arith.constant 0 : i32
    return %arg0, %c0_i32 : i32, i32
  }
}

module attributes {stable_mosaic.version = 11 : i64} {
  func.func @_matmul_bias_residual_kernel(%arg0: i32, %arg1: memref<16x64xf32, #tpu.memory_space<vmem>>, %arg2: memref<64x32xf32, #tpu.memory_space<vmem>>, %arg3: memref<1x32xf32, #tpu.memory_space<vmem>>, %arg4: memref<16x32xf32, #tpu.memory_space<vmem>>, %arg5: memref<16x32xf32, #tpu.memory_space<vmem>>) attributes {dimension_semantics = [#tpu.dimension_semantics<parallel>], iteration_bounds = array<i64: 1>, scalar_prefetch = 0 : i64, scratch_operands = 0 : i64, tpu.core_type = #tpu.core_type<tc>, window_params = [{transform_indices = @transform_0, window_bounds = array<i64: 16, 64>}, {pipeline_mode = #tpu.pipeline_mode<synchronous>, transform_indices = @transform_1, window_bounds = array<i64: 64, 32>}, {pipeline_mode = #tpu.pipeline_mode<synchronous>, transform_indices = @transform_2, window_bounds = array<i64: 1, 32>}, {transform_indices = @transform_3, window_bounds = array<i64: 16, 32>}, {transform_indices = @transform_4, window_bounds = array<i64: 16, 32>}]} {
    %c0 = arith.constant 0 : index
    %c0_0 = arith.constant 0 : index
    %0 = vector.load %arg1[%c0, %c0_0] : memref<16x64xf32, #tpu.memory_space<vmem>>, vector<16x64xf32>
    %c0_1 = arith.constant 0 : index
    %c0_2 = arith.constant 0 : index
    %1 = vector.load %arg2[%c0_1, %c0_2] : memref<64x32xf32, #tpu.memory_space<vmem>>, vector<64x32xf32>
    %cst = arith.constant dense<0.000000e+00> : vector<16x32xf32>
    %2 = tpu.matmul %0, %1, %cst {dimension_numbers = #tpu.dot_dimension_numbers<[1], [0], [0], [1], [0, 0, 1, 1], [], []>} : vector<16x64xf32>, vector<64x32xf32>, vector<16x32xf32> -> vector<16x32xf32>
    %c0_3 = arith.constant 0 : index
    %c0_4 = arith.constant 0 : index
    %3 = vector.load %arg3[%c0_3, %c0_4] : memref<1x32xf32, #tpu.memory_space<vmem>>, vector<1x32xf32>
    %4 = vector.broadcast %3 : vector<1x32xf32> to vector<16x32xf32>
    %5 = arith.addf %2, %4 : vector<16x32xf32>
    %c0_5 = arith.constant 0 : index
    %c0_6 = arith.constant 0 : index
    %6 = vector.load %arg4[%c0_5, %c0_6] : memref<16x32xf32, #tpu.memory_space<vmem>>, vector<16x32xf32>
    %7 = arith.addf %5, %6 : vector<16x32xf32>
    %c0_7 = arith.constant 0 : index
    %c0_8 = arith.constant 0 : index
    %8 = vector.load %arg5[%c0_7, %c0_8] : memref<16x32xf32, #tpu.memory_space<vmem>>, vector<16x32xf32>
    tpu.vector_store %arg5[%c0_7, %c0_8], %7 {strides = array<i32>} : memref<16x32xf32, #tpu.memory_space<vmem>>, vector<16x32xf32>,
    return
  }
  func.func @transform_0(%arg0: i32) -> (i32, i32) {
    %c0_i32 = arith.constant 0 : i32
    %c0_i32_0 = arith.constant 0 : i32
    return %arg0, %c0_i32 : i32, i32
  }
  func.func @transform_1(%arg0: i32) -> (i32, i32) {
    %c0_i32 = arith.constant 0 : i32
    %c0_i32_0 = arith.constant 0 : i32
    %c0_i32_1 = arith.constant 0 : i32
    return %c0_i32, %c0_i32_0 : i32, i32
  }
  func.func @transform_2(%arg0: i32) -> (i32, i32) {
    %c0_i32 = arith.constant 0 : i32
    %c0_i32_0 = arith.constant 0 : i32
    %c0_i32_1 = arith.constant 0 : i32
    return %c0_i32, %c0_i32_0 : i32, i32
  }
  func.func @transform_3(%arg0: i32) -> (i32, i32) {
    %c0_i32 = arith.constant 0 : i32
    %c0_i32_0 = arith.constant 0 : i32
    return %arg0, %c0_i32 : i32, i32
  }
  func.func @transform_4(%arg0: i32) -> (i32, i32) {
    %c0_i32 = arith.constant 0 : i32
    %c0_i32_0 = arith.constant 0 : i32
    return %arg0, %c0_i32 : i32, i32
  }
}

</mosaic_0001>

<llo_original>
// kernel: transformer_forward.13
$region0: #{transformer_forward.13}
  #allocation0 [shape = 'u32[]', space=smem, size = 0x4, offset = 0x4, fixed_abs, tag = 'smem constant byte address 0x4 - core index']
  #allocation1 [shape = 'u32[144,128]{1,0:T(1,128)}', space=vmem, size = 0x12000, scoped, tag = 'internal scratch']
  %s0 = inlined_call_operand.vmem [shape: f32[16,32], index: 0, kind: input, shape index: {}]
  %s1 = inlined_call_operand.vmem [shape: f32[1,32], index: 1, kind: input, shape index: {}]
  %s2 = inlined_call_operand.vmem [shape: f32[1,32], index: 2, kind: input, shape index: {}]
  %s3 = inlined_call_operand.vmem [shape: f32[32,64], index: 3, kind: input, shape index: {}]
  %s4 = inlined_call_operand.vmem [shape: f32[1,64], index: 4, kind: input, shape index: {}]
  %s5 = inlined_call_operand.vmem [shape: f32[16,64], index: 5, kind: output, shape index: {}]
  %s6 = sld [smem:[#allocation0]]
  $region30: #{transformer_forward.13} parent=0
    _
  %s8 = ssub.s32 1, %s6
  %s9 = scalar_select 0, %s8, %s6
  // Predicated region
  $region2: #{transformer_forward.13} parent=0 // pred_check
    _
  $region3: #{transformer_forward.13} parent=0 // pred_check_branch
    %11 = sbr.rel (0) target = $region5
  $region4: #{transformer_forward.13} parent=0 // pred_region
    _
  $region5: #{transformer_forward.13} parent=0 // pred_fallthru
    _
  // Predicated region
  $region6: #{transformer_forward.13} parent=0 // pred_check
    _
  $region7: #{transformer_forward.13} parent=0 // pred_check_branch
    %13 = sbr.rel (0) target = $region9
  $region8: #{transformer_forward.13} parent=0 // pred_region
    _
  $region9: #{transformer_forward.13} parent=0 // pred_fallthru
    _
  // Predicated region
  $region10: #{transformer_forward.13} parent=0 // pred_check
    _
  $region11: #{transformer_forward.13} parent=0 // pred_check_branch
    %15 = sbr.rel (0) target = $region13
  $region12: #{transformer_forward.13} parent=0 // pred_region
    _
  $region13: #{transformer_forward.13} parent=0 // pred_fallthru
    _
  // Predicated region
  $region14: #{transformer_forward.13} parent=0 // pred_check
    _
  $region15: #{transformer_forward.13} parent=0 // pred_check_branch
    %17 = sbr.rel (0) target = $region17
  $region16: #{transformer_forward.13} parent=0 // pred_region
    _
  $region17: #{transformer_forward.13} parent=0 // pred_fallthru
    _
  // Predicated region
  $region18: #{transformer_forward.13} parent=0 // pred_check
    _
  $region19: #{transformer_forward.13} parent=0 // pred_check_branch
    %19 = sbr.rel (0) target = $region21
  $region20: #{transformer_forward.13} parent=0 // pred_region
    _
  $region21: #{transformer_forward.13} parent=0 // pred_fallthru
    _
  %v20 = vld [vmem:[%s0] sm:$0xff]
  %v21 = vld [vmem:[%s0 + $0x8] sm:$0xff]
  %vm22 = vcmask 261120
  %v23 = vsel %vm22, %v20, 0.0
  %24 = vadd.xlane.f32.xlu0 %v23
  %v25 = vpop.xlane.xlu0 %24
  %v26 = vsel %vm22, %v21, 0.0
  %27 = vadd.xlane.f32.xlu0 %v26
  %v28 = vpop.xlane.xlu0 %27
  %v29 = vrcp.pop 32.0
  %v30 = vmul.f32 %v25, %v29
  %v31 = vmul.f32 %v28, %v29
  %v32 = vsub.f32 %v20, %v30
  %v33 = vsub.f32 %v21, %v31
  %v34 = vmul.f32 %v32, %v32
  %v35 = vmul.f32 %v33, %v33
  %v36 = vsel %vm22, %v34, 0.0
  %37 = vadd.xlane.f32.xlu0 %v36
  %v38 = vpop.xlane.xlu0 %37
  %v39 = vsel %vm22, %v35, 0.0
  %40 = vadd.xlane.f32.xlu0 %v39
  %v41 = vpop.xlane.xlu0 %40
  %v42 = vmul.f32 %v38, %v29
  %v43 = vmul.f32 %v41, %v29
  %v44 = vadd.f32 %v42, 1e-05
  %v45 = vadd.f32 %v43, 1e-05
  %v46 = vrsqrt.pop %v44
  %v47 = vrsqrt.pop %v45
  %v48 = vmul.f32 %v32, %v46
  %v49 = vmul.f32 %v33, %v47
  %v50 = vld [vmem:[%s1] sm:$0x1]
  %v52 = vlaneseq
  %v53 = vshrl.u32 %v52, 7
  %v54 = vsub.s32 0, %v53
  %v55 = vrot.slane %v50, %v54
  %v57 = vmul.f32 %v48, %v55
  %v58 = vmul.f32 %v49, %v55
  %v59 = vld [vmem:[%s2] sm:$0x1]
  %v61 = vlaneseq
  %v62 = vshrl.u32 %v61, 7
  %v63 = vsub.s32 0, %v62
  %v64 = vrot.slane %v59, %v63
  %v66 = vadd.f32 %v57, %v64
  %v67 = vadd.f32 %v58, %v64
  %v68 = vld [vmem:[%s3] sm:$0xff]
  %v69 = vld [vmem:[%s3 + $0x8] sm:$0xff]
  %v70 = vld [vmem:[%s3 + $0x10] sm:$0xff]
  %v71 = vld [vmem:[%s3 + $0x18] sm:$0xff]
  %v72 = vld [vmem:[%s4] sm:$0x1]
  %v74 = vlaneseq
  %v75 = vshrl.u32 %v74, 7
  %v76 = vsub.s32 0, %v75
  %v77 = vrot.slane %v72, %v76
  %v80 = vsel %vm22, %v66, 0
  %v83 = vsel %vm22, %v67, 0
  %85 = vmatprep.subr.mxu0 0.0
  %86 = vmatpush1.msra.mxu0 %v68
  %87 = vmatprep.subr.mxu0 0.0
  %88 = vmatpush1.msra.mxu0 %v69
  %89 = vmatprep.subr.mxu0 0.0
  %90 = vmatpush1.msra.mxu0 %v70
  %91 = vmatprep.subr.mxu0 0.0
  %92 = vmatpush1.msra.mxu0 %v71
  %93 = vmatprep.subr.mxu0 0.0
  %94 = vmatpush1.msra.mxu0 0.0
  %95 = vmatprep.subr.mxu0 0.0
  %96 = vmatpush1.msra.mxu0 0.0
  %97 = vmatprep.subr.mxu0 0.0
  %98 = vmatpush1.msra.mxu0 0.0
  %99 = vmatprep.subr.mxu0 0.0
  %100 = vmatpush1.msra.mxu0 0.0
  %101 = vmatprep.subr.mxu0 0.0
  %102 = vmatpush1.msra.mxu0 0.0
  %103 = vmatprep.subr.mxu0 0.0
  %104 = vmatpush1.msra.mxu0 0.0
  %105 = vmatprep.subr.mxu0 0.0
  %106 = vmatpush1.msra.mxu0 0.0
  %107 = vmatprep.subr.mxu0 0.0
  %108 = vmatpush1.msra.mxu0 0.0
  %109 = vmatprep.subr.mxu0 0.0
  %110 = vmatpush1.msra.mxu0 0.0
  %111 = vmatprep.subr.mxu0 0.0
  %112 = vmatpush1.msra.mxu0 0.0
  %113 = vmatprep.subr.mxu0 0.0
  %114 = vmatpush1.msra.mxu0 0.0
  %115 = vmatprep.subr.mxu0 0.0
  %116 = vmatpush1.msra.mxu0 0.0
  %117 = vmatprep.subr.mxu0 0.0
  %118 = vmatpush1.msra.mxu0 0.0
  %119 = vmatprep.subr.mxu0 0.0
  %120 = vmatpush1.msra.mxu0 0.0
  %121 = vmatprep.subr.mxu0 0.0
  %122 = vmatpush1.msra.mxu0 0.0
  %123 = vmatprep.subr.mxu0 0.0
  %124 = vmatpush1.msra.mxu0 0.0
  %125 = vmatprep.subr.mxu0 0.0
  %126 = vmatpush1.msra.mxu0 0.0
  %127 = vmatprep.subr.mxu0 0.0
  %128 = vmatpush1.msra.mxu0 0.0
  %129 = vmatprep.subr.mxu0 0.0
  %130 = vmatpush1.msra.mxu0 0.0
  %131 = vmatprep.subr.mxu0 0.0
  %132 = vmatpush1.msra.mxu0 0.0
  %133 = vmatprep.subr.mxu0 0.0
  %134 = vmatpush1.msra.mxu0 0.0
  %135 = vmatprep.subr.mxu0 0.0
  %136 = vmatpush1.msra.mxu0 0.0
  %137 = vmatprep.subr.mxu0 0.0
  %138 = vmatpush1.msra.mxu0 0.0
  %139 = vmatprep.subr.mxu0 0.0
  %140 = vmatpush1.msra.mxu0 0.0
  %141 = vmatprep.subr.mxu0 0.0
  %142 = vmatpush1.msra.mxu0 0.0
  %143 = vmatprep.subr.mxu0 0.0
  %144 = vmatpush1.msra.mxu0 0.0
  %145 = vmatprep.subr.mxu0 0.0
  %146 = vmatpush1.msra.mxu0 0.0
  %147 = vmatprep.subr.mxu0 0.0
  %148 = vmatpush1.msra.mxu0 0.0
  %149 = vmatprep.mubr.f32.mxu0 0.0
  %150 = vmatmul.mubr.f32.gmra.mrb[0].mxu0 %v80
  %v151 = vpop.f32.mrb[0].mxu0
  %v152 = vadd.f32 %v77, %v151
  %v153 = vpop.f32.mrb[0].mxu0
  %154 = vmatprep.mubr.f32.mxu0 0.0
  %155 = vmatmul.mubr.f32.gmra.mrb[0].mxu0 %v83
  %v156 = vpop.f32.mrb[0].mxu0
  %v157 = vadd.f32 %v77, %v156
  %v158 = vpop.f32.mrb[0].mxu0
  %159 = vdwg.mxu0
  %vm160 = vcmask 523264
  %161 = vst.msk [vmem:[%s5] sm:$0xff] %vm160, %v152
  %162 = vst.msk [vmem:[%s5 + $0x8] sm:$0xff] %vm160, %v157
  // Predicated region
  $region22: #{transformer_forward.13} parent=0 // pred_check
    _
  $region23: #{transformer_forward.13} parent=0 // pred_check_branch
    %164 = sbr.rel (0) target = $region25
  $region24: #{transformer_forward.13} parent=0 // pred_region
    _
  $region25: #{transformer_forward.13} parent=0 // pred_fallthru
    _
  // Predicated region
  $region26: #{transformer_forward.13} parent=0 // pred_check
    _
  $region27: #{transformer_forward.13} parent=0 // pred_check_branch
    %166 = sbr.rel (0) target = $region29
  $region28: #{transformer_forward.13} parent=0 // pred_region
    _
  $region29: #{transformer_forward.13} parent=0 // pred_fallthru
    _

// kernel: transformer_forward.10
$region0: #{transformer_forward.10}
  #allocation0 [shape = 'u32[]', space=smem, size = 0x4, offset = 0x4, fixed_abs, tag = 'smem constant byte address 0x4 - core index']
  #allocation1 [shape = 'u32[144,128]{1,0:T(1,128)}', space=vmem, size = 0x12000, scoped, tag = 'internal scratch']
  %s0 = inlined_call_operand.vmem [shape: f32[16,32], index: 0, kind: input, shape index: {}]
  %s1 = inlined_call_operand.vmem [shape: f32[1,32], index: 1, kind: input, shape index: {}]
  %s2 = inlined_call_operand.vmem [shape: f32[1,32], index: 2, kind: input, shape index: {}]
  %s3 = inlined_call_operand.vmem [shape: f32[32,96], index: 3, kind: input, shape index: {}]
  %s4 = inlined_call_operand.vmem [shape: f32[1,96], index: 4, kind: input, shape index: {}]
  %s5 = inlined_call_operand.vmem [shape: f32[16,96], index: 5, kind: output, shape index: {}]
  %s6 = sld [smem:[#allocation0]]
  $region30: #{transformer_forward.10} parent=0
    _
  %s8 = ssub.s32 1, %s6
  %s9 = scalar_select 0, %s8, %s6
  // Predicated region
  $region2: #{transformer_forward.10} parent=0 // pred_check
    _
  $region3: #{transformer_forward.10} parent=0 // pred_check_branch
    %11 = sbr.rel (0) target = $region5
  $region4: #{transformer_forward.10} parent=0 // pred_region
    _
  $region5: #{transformer_forward.10} parent=0 // pred_fallthru
    _
  // Predicated region
  $region6: #{transformer_forward.10} parent=0 // pred_check
    _
  $region7: #{transformer_forward.10} parent=0 // pred_check_branch
    %13 = sbr.rel (0) target = $region9
  $region8: #{transformer_forward.10} parent=0 // pred_region
    _
  $region9: #{transformer_forward.10} parent=0 // pred_fallthru
    _
  // Predicated region
  $region10: #{transformer_forward.10} parent=0 // pred_check
    _
  $region11: #{transformer_forward.10} parent=0 // pred_check_branch
    %15 = sbr.rel (0) target = $region13
  $region12: #{transformer_forward.10} parent=0 // pred_region
    _
  $region13: #{transformer_forward.10} parent=0 // pred_fallthru
    _
  // Predicated region
  $region14: #{transformer_forward.10} parent=0 // pred_check
    _
  $region15: #{transformer_forward.10} parent=0 // pred_check_branch
    %17 = sbr.rel (0) target = $region17
  $region16: #{transformer_forward.10} parent=0 // pred_region
    _
  $region17: #{transformer_forward.10} parent=0 // pred_fallthru
    _
  // Predicated region
  $region18: #{transformer_forward.10} parent=0 // pred_check
    _
  $region19: #{transformer_forward.10} parent=0 // pred_check_branch
    %19 = sbr.rel (0) target = $region21
  $region20: #{transformer_forward.10} parent=0 // pred_region
    _
  $region21: #{transformer_forward.10} parent=0 // pred_fallthru
    _
  %v20 = vld [vmem:[%s0] sm:$0xff]
  %v21 = vld [vmem:[%s0 + $0x8] sm:$0xff]
  %vm22 = vcmask 261120
  %v23 = vsel %vm22, %v20, 0.0
  %24 = vadd.xlane.f32.xlu0 %v23
  %v25 = vpop.xlane.xlu0 %24
  %v26 = vsel %vm22, %v21, 0.0
  %27 = vadd.xlane.f32.xlu0 %v26
  %v28 = vpop.xlane.xlu0 %27
  %v29 = vrcp.pop 32.0
  %v30 = vmul.f32 %v25, %v29
  %v31 = vmul.f32 %v28, %v29
  %v32 = vsub.f32 %v20, %v30
  %v33 = vsub.f32 %v21, %v31
  %v34 = vmul.f32 %v32, %v32
  %v35 = vmul.f32 %v33, %v33
  %v36 = vsel %vm22, %v34, 0.0
  %37 = vadd.xlane.f32.xlu0 %v36
  %v38 = vpop.xlane.xlu0 %37
  %v39 = vsel %vm22, %v35, 0.0
  %40 = vadd.xlane.f32.xlu0 %v39
  %v41 = vpop.xlane.xlu0 %40
  %v42 = vmul.f32 %v38, %v29
  %v43 = vmul.f32 %v41, %v29
  %v44 = vadd.f32 %v42, 1e-05
  %v45 = vadd.f32 %v43, 1e-05
  %v46 = vrsqrt.pop %v44
  %v47 = vrsqrt.pop %v45
  %v48 = vmul.f32 %v32, %v46
  %v49 = vmul.f32 %v33, %v47
  %v50 = vld [vmem:[%s1] sm:$0x1]
  %v52 = vlaneseq
  %v53 = vshrl.u32 %v52, 7
  %v54 = vsub.s32 0, %v53
  %v55 = vrot.slane %v50, %v54
  %v57 = vmul.f32 %v48, %v55
  %v58 = vmul.f32 %v49, %v55
  %v59 = vld [vmem:[%s2] sm:$0x1]
  %v61 = vlaneseq
  %v62 = vshrl.u32 %v61, 7
  %v63 = vsub.s32 0, %v62
  %v64 = vrot.slane %v59, %v63
  %v66 = vadd.f32 %v57, %v64
  %v67 = vadd.f32 %v58, %v64
  %v68 = vld [vmem:[%s3] sm:$0xff]
  %v69 = vld [vmem:[%s3 + $0x8] sm:$0xff]
  %v70 = vld [vmem:[%s3 + $0x10] sm:$0xff]
  %v71 = vld [vmem:[%s3 + $0x18] sm:$0xff]
  %v72 = vld [vmem:[%s4] sm:$0x1]
  %v74 = vlaneseq
  %v75 = vshrl.u32 %v74, 7
  %v76 = vsub.s32 0, %v75
  %v77 = vrot.slane %v72, %v76
  %v80 = vsel %vm22, %v66, 0
  %v83 = vsel %vm22, %v67, 0
  %85 = vmatprep.subr.mxu0 0.0
  %86 = vmatpush1.msra.mxu0 %v68
  %87 = vmatprep.subr.mxu0 0.0
  %88 = vmatpush1.msra.mxu0 %v69
  %89 = vmatprep.subr.mxu0 0.0
  %90 = vmatpush1.msra.mxu0 %v70
  %91 = vmatprep.subr.mxu0 0.0
  %92 = vmatpush1.msra.mxu0 %v71
  %93 = vmatprep.subr.mxu0 0.0
  %94 = vmatpush1.msra.mxu0 0.0
  %95 = vmatprep.subr.mxu0 0.0
  %96 = vmatpush1.msra.mxu0 0.0
  %97 = vmatprep.subr.mxu0 0.0
  %98 = vmatpush1.msra.mxu0 0.0
  %99 = vmatprep.subr.mxu0 0.0
  %100 = vmatpush1.msra.mxu0 0.0
  %101 = vmatprep.subr.mxu0 0.0
  %102 = vmatpush1.msra.mxu0 0.0
  %103 = vmatprep.subr.mxu0 0.0
  %104 = vmatpush1.msra.mxu0 0.0
  %105 = vmatprep.subr.mxu0 0.0
  %106 = vmatpush1.msra.mxu0 0.0
  %107 = vmatprep.subr.mxu0 0.0
  %108 = vmatpush1.msra.mxu0 0.0
  %109 = vmatprep.subr.mxu0 0.0
  %110 = vmatpush1.msra.mxu0 0.0
  %111 = vmatprep.subr.mxu0 0.0
  %112 = vmatpush1.msra.mxu0 0.0
  %113 = vmatprep.subr.mxu0 0.0
  %114 = vmatpush1.msra.mxu0 0.0
  %115 = vmatprep.subr.mxu0 0.0
  %116 = vmatpush1.msra.mxu0 0.0
  %117 = vmatprep.subr.mxu0 0.0
  %118 = vmatpush1.msra.mxu0 0.0
  %119 = vmatprep.subr.mxu0 0.0
  %120 = vmatpush1.msra.mxu0 0.0
  %121 = vmatprep.subr.mxu0 0.0
  %122 = vmatpush1.msra.mxu0 0.0
  %123 = vmatprep.subr.mxu0 0.0
  %124 = vmatpush1.msra.mxu0 0.0
  %125 = vmatprep.subr.mxu0 0.0
  %126 = vmatpush1.msra.mxu0 0.0
  %127 = vmatprep.subr.mxu0 0.0
  %128 = vmatpush1.msra.mxu0 0.0
  %129 = vmatprep.subr.mxu0 0.0
  %130 = vmatpush1.msra.mxu0 0.0
  %131 = vmatprep.subr.mxu0 0.0
  %132 = vmatpush1.msra.mxu0 0.0
  %133 = vmatprep.subr.mxu0 0.0
  %134 = vmatpush1.msra.mxu0 0.0
  %135 = vmatprep.subr.mxu0 0.0
  %136 = vmatpush1.msra.mxu0 0.0
  %137 = vmatprep.subr.mxu0 0.0
  %138 = vmatpush1.msra.mxu0 0.0
  %139 = vmatprep.subr.mxu0 0.0
  %140 = vmatpush1.msra.mxu0 0.0
  %141 = vmatprep.subr.mxu0 0.0
  %142 = vmatpush1.msra.mxu0 0.0
  %143 = vmatprep.subr.mxu0 0.0
  %144 = vmatpush1.msra.mxu0 0.0
  %145 = vmatprep.subr.mxu0 0.0
  %146 = vmatpush1.msra.mxu0 0.0
  %147 = vmatprep.subr.mxu0 0.0
  %148 = vmatpush1.msra.mxu0 0.0
  %149 = vmatprep.mubr.f32.mxu0 0.0
  %150 = vmatmul.mubr.f32.gmra.mrb[0].mxu0 %v80
  %v151 = vpop.f32.mrb[0].mxu0
  %v152 = vadd.f32 %v77, %v151
  %v153 = vpop.f32.mrb[0].mxu0
  %154 = vmatprep.mubr.f32.mxu0 0.0
  %155 = vmatmul.mubr.f32.gmra.mrb[0].mxu0 %v83
  %v156 = vpop.f32.mrb[0].mxu0
  %v157 = vadd.f32 %v77, %v156
  %v158 = vpop.f32.mrb[0].mxu0
  %159 = vdwg.mxu0
  %vm160 = vcmask 785408
  %161 = vst.msk [vmem:[%s5] sm:$0xff] %vm160, %v152
  %162 = vst.msk [vmem:[%s5 + $0x8] sm:$0xff] %vm160, %v157
  // Predicated region
  $region22: #{transformer_forward.10} parent=0 // pred_check
    _
  $region23: #{transformer_forward.10} parent=0 // pred_check_branch
    %164 = sbr.rel (0) target = $region25
  $region24: #{transformer_forward.10} parent=0 // pred_region
    _
  $region25: #{transformer_forward.10} parent=0 // pred_fallthru
    _
  // Predicated region
  $region26: #{transformer_forward.10} parent=0 // pred_check
    _
  $region27: #{transformer_forward.10} parent=0 // pred_check_branch
    %166 = sbr.rel (0) target = $region29
  $region28: #{transformer_forward.10} parent=0 // pred_region
    _
  $region29: #{transformer_forward.10} parent=0 // pred_fallthru
    _

// kernel: transformer_forward.11
$region0: #{transformer_forward.11}
  #allocation0 [shape = 'u32[]', space=smem, size = 0x4, offset = 0x4, fixed_abs, tag = 'smem constant byte address 0x4 - core index']
  #allocation1 [shape = 'u32[144,128]{1,0:T(1,128)}', space=vmem, size = 0x12000, scoped, tag = 'internal scratch']
  %s0 = inlined_call_operand.vmem [shape: f32[4,8,16], index: 0, kind: input, shape index: {}]
  %s1 = inlined_call_operand.vmem [shape: f32[4,8,16], index: 1, kind: input, shape index: {}]
  %s2 = inlined_call_operand.vmem [shape: f32[4,8,16], index: 2, kind: input, shape index: {}]
  %s3 = inlined_call_operand.vmem [shape: f32[4,8,16], index: 3, kind: output, shape index: {}]
  %s4 = sld [smem:[#allocation0]]
  $region45: #{transformer_forward.11} parent=0
    _
  %s6 = ssub.s32 1, %s4
  %s7 = scalar_select 0, %s6, %s4
  loop: start=0, step=1, limit=6
  $region2: #{transformer_forward.11} parent=0 // loop_pre_header
    _
  $region3: #{transformer_forward.11} parent=0 // loop_header
    %s9 = sphi 0, %s13
    %p10 = scmp.ge.s32.totalorder %s9, 6
    %s19 = sphi 0, %s21
    %s22 = sphi 0, %s19
    %s23 = sphi 0, %s22
    %s39 = sphi 0, %s23
    %s45 = sphi 0, %s47
    %s48 = sphi 0, %s45
    %s49 = sphi 0, %s48
    %s65 = sphi 0, %s49
    %s71 = sphi 0, %s73
    %s74 = sphi 0, %s71
    %s75 = sphi 0, %s74
    %s91 = sphi 0, %s75
    %s97 = sphi 0, %s99
    %s100 = sphi 0, %s97
    %s101 = sphi 0, %s100
    %s117 = sphi 0, %s101
  $region4: #{transformer_forward.11} parent=0 // loop_header_branch
    %12 = sbr.rel (%p10) target = $region8
  $region5: #{transformer_forward.11} parent=0 // loop_body
    %s14 = ssub.s32 %s9, 1
    %s15 = ssub.s32 %s9, 2
    %s16 = sadd.s32 %s9, 1
    %s17 = ssub.s32 %s9, %s16
    %p18 = scmp.eq.s32.totalorder %s17, 0
    %s20 = sadd.s32 %s19, 1
    %s21 = scalar_select %p18, %s19, %s20
    %p24 = pneg %p18
    %p25 = scmp.eq.s32.totalorder %s9, 3
    %p26 = por %p24, %p25
    %p27 = scmp.ne.s32.totalorder %s19, %s22
    %p28 = scmp.eq.s32.totalorder %s9, 0
    %p29 = por %p27, %p28
    %p30 = scmp.ne.s32.totalorder %s19, %s22
    %p31 = scmp.eq.s32.totalorder %s14, 3
    %p32 = por %p30, %p31
    %p33 = scmp.ne.s32.totalorder %s22, %s23
    %p34 = scmp.eq.s32.totalorder %s14, 0
    %p35 = por %p33, %p34
    %p36 = scmp.ne.s32.totalorder %s22, %s23
    %p37 = scmp.eq.s32.totalorder %s15, 3
    %p38 = por %p36, %p37
    %p40 = scmp.ne.s32.totalorder %s23, %s39
    %p41 = scmp.eq.s32.totalorder %s15, 0
    %p42 = por %p40, %p41
    %s43 = ssub.s32 %s9, %s16
    %p44 = scmp.eq.s32.totalorder %s43, 0
    %s46 = sadd.s32 %s45, 1
    %s47 = scalar_select %p44, %s45, %s46
    %p50 = pneg %p44
    %p51 = scmp.eq.s32.totalorder %s9, 3
    %p52 = por %p50, %p51
    %p53 = scmp.ne.s32.totalorder %s45, %s48
    %p54 = scmp.eq.s32.totalorder %s9, 0
    %p55 = por %p53, %p54
    %p56 = scmp.ne.s32.totalorder %s45, %s48
    %p57 = scmp.eq.s32.totalorder %s14, 3
    %p58 = por %p56, %p57
    %p59 = scmp.ne.s32.totalorder %s48, %s49
    %p60 = scmp.eq.s32.totalorder %s14, 0
    %p61 = por %p59, %p60
    %p62 = scmp.ne.s32.totalorder %s48, %s49
    %p63 = scmp.eq.s32.totalorder %s15, 3
    %p64 = por %p62, %p63
    %p66 = scmp.ne.s32.totalorder %s49, %s65
    %p67 = scmp.eq.s32.totalorder %s15, 0
    %p68 = por %p66, %p67
    %s69 = ssub.s32 %s9, %s16
    %p70 = scmp.eq.s32.totalorder %s69, 0
    %s72 = sadd.s32 %s71, 1
    %s73 = scalar_select %p70, %s71, %s72
    %p76 = pneg %p70
    %p77 = scmp.eq.s32.totalorder %s9, 3
    %p78 = por %p76, %p77
    %p79 = scmp.ne.s32.totalorder %s71, %s74
    %p80 = scmp.eq.s32.totalorder %s9, 0
    %p81 = por %p79, %p80
    %p82 = scmp.ne.s32.totalorder %s71, %s74
    %p83 = scmp.eq.s32.totalorder %s14, 3
    %p84 = por %p82, %p83
    %p85 = scmp.ne.s32.totalorder %s74, %s75
    %p86 = scmp.eq.s32.totalorder %s14, 0
    %p87 = por %p85, %p86
    %p88 = scmp.ne.s32.totalorder %s74, %s75
    %p89 = scmp.eq.s32.totalorder %s15, 3
    %p90 = por %p88, %p89
    %p92 = scmp.ne.s32.totalorder %s75, %s91
    %p93 = scmp.eq.s32.totalorder %s15, 0
    %p94 = por %p92, %p93
    %s95 = ssub.s32 %s9, %s16
    %p96 = scmp.eq.s32.totalorder %s95, 0
    %s98 = sadd.s32 %s97, 1
    %s99 = scalar_select %p96, %s97, %s98
    %p102 = pneg %p96
    %p103 = scmp.eq.s32.totalorder %s9, 3
    %p104 = por %p102, %p103
    %p105 = scmp.ne.s32.totalorder %s97, %s100
    %p106 = scmp.eq.s32.totalorder %s9, 0
    %p107 = por %p105, %p106
    %p108 = scmp.ne.s32.totalorder %s97, %s100
    %p109 = scmp.eq.s32.totalorder %s14, 3
    %p110 = por %p108, %p109
    %p111 = scmp.ne.s32.totalorder %s100, %s101
    %p112 = scmp.eq.s32.totalorder %s14, 0
    %p113 = por %p111, %p112
    %p114 = scmp.ne.s32.totalorder %s100, %s101
    %p115 = scmp.eq.s32.totalorder %s15, 3
    %p116 = por %p114, %p115
    %p118 = scmp.ne.s32.totalorder %s101, %s117
    %p119 = scmp.eq.s32.totalorder %s15, 0
    %p120 = por %p118, %p119
    %p121 = scmp.le.s32.totalorder 1, %s9
    %p122 = scmp.lt.s32.totalorder %s9, 5
    %p123 = pnand %p121, %p122
    %p124 = pneg %p123
    // Predicated region
    $region9: #{transformer_forward.11} parent=5 // pred_check
      _
    $region10: #{transformer_forward.11} parent=5 // pred_check_branch
      %126 = sbr.rel (%p123) target = $region12
    $region11: #{transformer_forward.11} parent=5 // pred_region
      %s127 = ssub.s32 %s9, 1
    $region12: #{transformer_forward.11} parent=5 // pred_fallthru
      _
    %p128 = scmp.lt.s32.totalorder %s9, 4
    // Predicated region
    $region13: #{transformer_forward.11} parent=5 // pred_check
      %p129 = pneg %p128
    $region14: #{transformer_forward.11} parent=5 // pred_check_branch
      %131 = sbr.rel (%p129) target = $region16
    $region15: #{transformer_forward.11} parent=5 // pred_region
      // Predicated region
      $region17: #{transformer_forward.11} parent=15 // pred_check
        %p132 = pneg %p29
      $region18: #{transformer_forward.11} parent=15 // pred_check_branch
        %134 = sbr.rel (%p132) target = $region20
      $region19: #{transformer_forward.11} parent=15 // pred_region
        %p135 = scmp.lt.s32.totalorder %s9, 3
        %s136 = scalar_select %p135, %s9, 3
        %s137 = smul.addr %s136, 8
        %s138 = scalar_lea.vmem %s0, %s137
      $region20: #{transformer_forward.11} parent=15 // pred_fallthru
        _
      // Predicated region
      $region21: #{transformer_forward.11} parent=15 // pred_check
        %p139 = pneg %p55
      $region22: #{transformer_forward.11} parent=15 // pred_check_branch
        %141 = sbr.rel (%p139) target = $region24
      $region23: #{transformer_forward.11} parent=15 // pred_region
        %p142 = scmp.lt.s32.totalorder %s9, 3
        %s143 = scalar_select %p142, %s9, 3
        %s144 = smul.addr %s143, 8
        %s145 = scalar_lea.vmem %s1, %s144
      $region24: #{transformer_forward.11} parent=15 // pred_fallthru
        _
      // Predicated region
      $region25: #{transformer_forward.11} parent=15 // pred_check
        %p146 = pneg %p81
      $region26: #{transformer_forward.11} parent=15 // pred_check_branch
        %148 = sbr.rel (%p146) target = $region28
      $region27: #{transformer_forward.11} parent=15 // pred_region
        %p149 = scmp.lt.s32.totalorder %s9, 3
        %s150 = scalar_select %p149, %s9, 3
        %s151 = smul.addr %s150, 8
        %s152 = scalar_lea.vmem %s2, %s151
      $region28: #{transformer_forward.11} parent=15 // pred_fallthru
        _
    $region16: #{transformer_forward.11} parent=5 // pred_fallthru
      _
    %p153 = scmp.le.s32.totalorder 1, %s9
    %p154 = scmp.lt.s32.totalorder %s9, 5
    %p155 = pnand %p153, %p154
    %p156 = pneg %p155
    // Predicated region
    $region29: #{transformer_forward.11} parent=5 // pred_check
      _
    $region30: #{transformer_forward.11} parent=5 // pred_check_branch
      %158 = sbr.rel (%p155) target = $region32
    $region31: #{transformer_forward.11} parent=5 // pred_region
      %s159 = ssub.s32 %s9, 1
      %p160 = scmp.lt.s32.totalorder %s14, 3
      %s161 = scalar_select %p160, %s14, 3
      %s162 = smul.addr %s161, 8
      %s163 = scalar_lea.vmem %s0, %s162
      %p164 = pneg %p35
      %p165 = pneg %p32
      %p166 = scmp.lt.s32.totalorder %s14, 3
      %s167 = scalar_select %p166, %s14, 3
      %s168 = smul.addr %s167, 8
      %s169 = scalar_lea.vmem %s1, %s168
      %p170 = pneg %p61
      %p171 = pneg %p58
      %p172 = scmp.lt.s32.totalorder %s14, 3
      %s173 = scalar_select %p172, %s14, 3
      %s174 = smul.addr %s173, 8
      %s175 = scalar_lea.vmem %s2, %s174
      %p176 = pneg %p87
      %p177 = pneg %p84
      %p178 = pneg %p113
      %p179 = pneg %p110
      %p180 = scmp.lt.s32.totalorder %s14, 3
      %s181 = scalar_select %p180, %s14, 3
      %s182 = smul.addr %s181, 8
      %s183 = scalar_lea.vmem %s3, %s182
      %p184 = scmp.lt.s32.totalorder %s14, 3
      %s185 = scalar_select %p184, %s14, 3
      %s186 = smul.addr %s185, 8
      %s187 = scalar_lea.vmem %s0, %s186
      %p188 = scmp.lt.s32.totalorder %s14, 3
      %s189 = scalar_select %p188, %s14, 3
      %s190 = smul.addr %s189, 8
      %s191 = scalar_lea.vmem %s1, %s190
      %p192 = scmp.lt.s32.totalorder %s14, 3
      %s193 = scalar_select %p192, %s14, 3
      %s194 = smul.addr %s193, 8
      %s195 = scalar_lea.vmem %s2, %s194
      %p196 = scmp.lt.s32.totalorder %s14, 3
      %s197 = scalar_select %p196, %s14, 3
      %s198 = smul.addr %s197, 8
      %s199 = scalar_lea.vmem %s3, %s198
      %v200 = vld [vmem:[%s187] sm:$0xff]
      %v201 = vld [vmem:[%s191] sm:$0xff]
      %v202 = vld [vmem:[%s195] sm:$0xff]
      %vm203 = vcmask 130048
      %v205 = vsel %vm203, %v200, 0
      %v208 = vsel %vm203, %v201, 0
      %210 = vmatprep.subr.mxu0 0.0
      %211 = vmatpush1.xpose.msra.mxu0 %v208
      %212 = vmatprep.subr.mxu0 0.0
      %213 = vmatpush1.xpose.msra.mxu0 0.0
      %214 = vmatprep.subr.mxu0 0.0
      %215 = vmatpush1.xpose.msra.mxu0 0.0
      %216 = vmatprep.subr.mxu0 0.0
      %217 = vmatpush1.xpose.msra.mxu0 0.0
      %218 = vmatprep.subr.mxu0 0.0
      %219 = vmatpush1.xpose.msra.mxu0 0.0
      %220 = vmatprep.subr.mxu0 0.0
      %221 = vmatpush1.xpose.msra.mxu0 0.0
      %222 = vmatprep.subr.mxu0 0.0
      %223 = vmatpush1.xpose.msra.mxu0 0.0
      %224 = vmatprep.subr.mxu0 0.0
      %225 = vmatpush1.xpose.msra.mxu0 0.0
      %226 = vmatprep.subr.mxu0 0.0
      %227 = vmatpush1.xpose.msra.mxu0 0.0
      %228 = vmatprep.subr.mxu0 0.0
      %229 = vmatpush1.xpose.msra.mxu0 0.0
      %230 = vmatprep.subr.mxu0 0.0
      %231 = vmatpush1.xpose.msra.mxu0 0.0
      %232 = vmatprep.subr.mxu0 0.0
      %233 = vmatpush1.xpose.msra.mxu0 0.0
      %234 = vmatprep.subr.mxu0 0.0
      %235 = vmatpush1.xpose.msra.mxu0 0.0
      %236 = vmatprep.subr.mxu0 0.0
      %237 = vmatpush1.xpose.msra.mxu0 0.0
      %238 = vmatprep.subr.mxu0 0.0
      %239 = vmatpush1.xpose.msra.mxu0 0.0
      %240 = vmatprep.subr.mxu0 0.0
      %241 = vmatpush1.xpose.msra.mxu0 0.0
      %242 = vmatprep.subr.mxu0 0.0
      %243 = vmatpush1.xpose.msra.mxu0 0.0
      %244 = vmatprep.subr.mxu0 0.0
      %245 = vmatpush1.xpose.msra.mxu0 0.0
      %246 = vmatprep.subr.mxu0 0.0
      %247 = vmatpush1.xpose.msra.mxu0 0.0
      %248 = vmatprep.subr.mxu0 0.0
      %249 = vmatpush1.xpose.msra.mxu0 0.0
      %250 = vmatprep.subr.mxu0 0.0
      %251 = vmatpush1.xpose.msra.mxu0 0.0
      %252 = vmatprep.subr.mxu0 0.0
      %253 = vmatpush1.xpose.msra.mxu0 0.0
      %254 = vmatprep.subr.mxu0 0.0
      %255 = vmatpush1.xpose.msra.mxu0 0.0
      %256 = vmatprep.subr.mxu0 0.0
      %257 = vmatpush1.xpose.msra.mxu0 0.0
      %258 = vmatprep.subr.mxu0 0.0
      %259 = vmatpush1.xpose.msra.mxu0 0.0
      %260 = vmatprep.subr.mxu0 0.0
      %261 = vmatpush1.xpose.msra.mxu0 0.0
      %262 = vmatprep.subr.mxu0 0.0
      %263 = vmatpush1.xpose.msra.mxu0 0.0
      %264 = vmatprep.subr.mxu0 0.0
      %265 = vmatpush1.xpose.msra.mxu0 0.0
      %266 = vmatprep.subr.mxu0 0.0
      %267 = vmatpush1.xpose.msra.mxu0 0.0
      %268 = vmatprep.subr.mxu0 0.0
      %269 = vmatpush1.xpose.msra.mxu0 0.0
      %270 = vmatprep.subr.mxu0 0.0
      %271 = vmatpush1.xpose.msra.mxu0 0.0
      %272 = vmatprep.subr.mxu0 0.0
      %273 = vmatpush1.xpose.msra.mxu0 0.0
      %274 = vmatprep.mubr.f32.mxu0 0.0
      %275 = vmatmul.mubr.f32.gmra.mrb[0].mxu0 %v205
      %v276 = vpop.f32.mrb[0].mxu0
      %v277 = vadd.f32 0.0, %v276
      %v278 = vpop.f32.mrb[0].mxu0
      %279 = vdwg.mxu0
      %v280 = vmul.f32 %v277, 0.25
      %vm281 = vcmask 64512
      %v282 = vsel %vm281, %v280, -inf
      %283 = vmax.xlane.f32.xlu0 %v282
      %v284 = vpop.xlane.xlu0 %283
      %v285 = vsub.f32 %v280, %v284
      %v286 = vmul.f32 %v285, 1.442695
      %v287 = vpow.pop %v286
      %v288 = vsel %vm281, %v287, 0.0
      %289 = vadd.xlane.f32.xlu0 %v288
      %v290 = vpop.xlane.xlu0 %289
      %v291 = vrcp.pop %v290
      %v292 = vmul.f32 %v287, %v291
      %v294 = vsel %vm281, %v292, 0
      %296 = vmatprep.subr.mxu0 0.0
      %297 = vmatpush1.msra.mxu0 %v202
      %298 = vmatprep.subr.mxu0 0.0
      %299 = vmatpush1.msra.mxu0 0.0
      %300 = vmatprep.subr.mxu0 0.0
      %301 = vmatpush1.msra.mxu0 0.0
      %302 = vmatprep.subr.mxu0 0.0
      %303 = vmatpush1.msra.mxu0 0.0
      %304 = vmatprep.subr.mxu0 0.0
      %305 = vmatpush1.msra.mxu0 0.0
      %306 = vmatprep.subr.mxu0 0.0
      %307 = vmatpush1.msra.mxu0 0.0
      %308 = vmatprep.subr.mxu0 0.0
      %309 = vmatpush1.msra.mxu0 0.0
      %310 = vmatprep.subr.mxu0 0.0
      %311 = vmatpush1.msra.mxu0 0.0
      %312 = vmatprep.subr.mxu0 0.0
      %313 = vmatpush1.msra.mxu0 0.0
      %314 = vmatprep.subr.mxu0 0.0
      %315 = vmatpush1.msra.mxu0 0.0
      %316 = vmatprep.subr.mxu0 0.0
      %317 = vmatpush1.msra.mxu0 0.0
      %318 = vmatprep.subr.mxu0 0.0
      %319 = vmatpush1.msra.mxu0 0.0
      %320 = vmatprep.subr.mxu0 0.0
      %321 = vmatpush1.msra.mxu0 0.0
      %322 = vmatprep.subr.mxu0 0.0
      %323 = vmatpush1.msra.mxu0 0.0
      %324 = vmatprep.subr.mxu0 0.0
      %325 = vmatpush1.msra.mxu0 0.0
      %326 = vmatprep.subr.mxu0 0.0
      %327 = vmatpush1.msra.mxu0 0.0
      %328 = vmatprep.subr.mxu0 0.0
      %329 = vmatpush1.msra.mxu0 0.0
      %330 = vmatprep.subr.mxu0 0.0
      %331 = vmatpush1.msra.mxu0 0.0
      %332 = vmatprep.subr.mxu0 0.0
      %333 = vmatpush1.msra.mxu0 0.0
      %334 = vmatprep.subr.mxu0 0.0
      %335 = vmatpush1.msra.mxu0 0.0
      %336 = vmatprep.subr.mxu0 0.0
      %337 = vmatpush1.msra.mxu0 0.0
      %338 = vmatprep.subr.mxu0 0.0
      %339 = vmatpush1.msra.mxu0 0.0
      %340 = vmatprep.subr.mxu0 0.0
      %341 = vmatpush1.msra.mxu0 0.0
      %342 = vmatprep.subr.mxu0 0.0
      %343 = vmatpush1.msra.mxu0 0.0
      %344 = vmatprep.subr.mxu0 0.0
      %345 = vmatpush1.msra.mxu0 0.0
      %346 = vmatprep.subr.mxu0 0.0
      %347 = vmatpush1.msra.mxu0 0.0
      %348 = vmatprep.subr.mxu0 0.0
      %349 = vmatpush1.msra.mxu0 0.0
      %350 = vmatprep.subr.mxu0 0.0
      %351 = vmatpush1.msra.mxu0 0.0
      %352 = vmatprep.subr.mxu0 0.0
      %353 = vmatpush1.msra.mxu0 0.0
      %354 = vmatprep.subr.mxu0 0.0
      %355 = vmatpush1.msra.mxu0 0.0
      %356 = vmatprep.subr.mxu0 0.0
      %357 = vmatpush1.msra.mxu0 0.0
      %358 = vmatprep.subr.mxu0 0.0
      %359 = vmatpush1.msra.mxu0 0.0
      %360 = vmatprep.mubr.f32.mxu0 0.0
      %361 = vmatmul.mubr.f32.gmra.mrb[0].mxu0 %v294
      %v362 = vpop.f32.mrb[0].mxu0
      %v363 = vadd.f32 0.0, %v362
      %v364 = vpop.f32.mrb[0].mxu0
      %365 = vdwg.mxu0
      %366 = vst.msk [vmem:[%s199] sm:$0xff] %vm203, %v363
      %p367 = scmp.lt.s32.totalorder %s14, 3
      %s368 = scalar_select %p367, %s14, 3
      %s369 = smul.addr %s368, 8
      %s370 = scalar_lea.vmem %s3, %s369
      // Predicated region
      $region33: #{transformer_forward.11} parent=31 // pred_check
        %p371 = pneg %p110
      $region34: #{transformer_forward.11} parent=31 // pred_check_branch
        %373 = sbr.rel (%p371) target = $region36
      $region35: #{transformer_forward.11} parent=31 // pred_region
        _
      $region36: #{transformer_forward.11} parent=31 // pred_fallthru
        _
    $region32: #{transformer_forward.11} parent=5 // pred_fallthru
      _
    %p374 = scmp.le.s32.totalorder 2, %s9
    // Predicated region
    $region37: #{transformer_forward.11} parent=5 // pred_check
      %p375 = pneg %p374
    $region38: #{transformer_forward.11} parent=5 // pred_check_branch
      %377 = sbr.rel (%p375) target = $region40
    $region39: #{transformer_forward.11} parent=5 // pred_region
      %s378 = ssub.s32 %s9, 2
      // Predicated region
      $region41: #{transformer_forward.11} parent=39 // pred_check
        %p379 = pneg %p116
      $region42: #{transformer_forward.11} parent=39 // pred_check_branch
        %381 = sbr.rel (%p379) target = $region44
      $region43: #{transformer_forward.11} parent=39 // pred_region
        %p382 = scmp.lt.s32.totalorder %s15, 3
        %s383 = scalar_select %p382, %s15, 3
        %s384 = smul.addr %s383, 8
        %s385 = scalar_lea.vmem %s3, %s384
      $region44: #{transformer_forward.11} parent=39 // pred_fallthru
        _
    $region40: #{transformer_forward.11} parent=5 // pred_fallthru
      _
  $region6: #{transformer_forward.11} parent=0 // loop_footer
    %s13 = sadd.s32 1, %s9
  $region7: #{transformer_forward.11} parent=0 // loop_footer_branch
    %8 = sbr.rel target = $region3
  $region8: #{transformer_forward.11} parent=0 // loop_exit
    _

// kernel: transformer_forward.12
$region0: #{transformer_forward.12}
  #allocation0 [shape = 'u32[]', space=smem, size = 0x4, offset = 0x4, fixed_abs, tag = 'smem constant byte address 0x4 - core index']
  #allocation1 [shape = 'u32[144,128]{1,0:T(1,128)}', space=vmem, size = 0x12000, scoped, tag = 'internal scratch']
  %s0 = inlined_call_operand.vmem [shape: f32[16,32], index: 0, kind: input, shape index: {}]
  %s1 = inlined_call_operand.vmem [shape: f32[32,32], index: 1, kind: input, shape index: {}]
  %s2 = inlined_call_operand.vmem [shape: f32[1,32], index: 2, kind: input, shape index: {}]
  %s3 = inlined_call_operand.vmem [shape: f32[16,32], index: 3, kind: input, shape index: {}]
  %s4 = inlined_call_operand.vmem [shape: f32[16,32], index: 4, kind: output, shape index: {}]
  %s5 = sld [smem:[#allocation0]]
  $region26: #{transformer_forward.12} parent=0
    _
  %s7 = ssub.s32 1, %s5
  %s8 = scalar_select 0, %s7, %s5
  // Predicated region
  $region2: #{transformer_forward.12} parent=0 // pred_check
    _
  $region3: #{transformer_forward.12} parent=0 // pred_check_branch
    %10 = sbr.rel (0) target = $region5
  $region4: #{transformer_forward.12} parent=0 // pred_region
    _
  $region5: #{transformer_forward.12} parent=0 // pred_fallthru
    _
  // Predicated region
  $region6: #{transformer_forward.12} parent=0 // pred_check
    _
  $region7: #{transformer_forward.12} parent=0 // pred_check_branch
    %12 = sbr.rel (0) target = $region9
  $region8: #{transformer_forward.12} parent=0 // pred_region
    _
  $region9: #{transformer_forward.12} parent=0 // pred_fallthru
    _
  // Predicated region
  $region10: #{transformer_forward.12} parent=0 // pred_check
    _
  $region11: #{transformer_forward.12} parent=0 // pred_check_branch
    %14 = sbr.rel (0) target = $region13
  $region12: #{transformer_forward.12} parent=0 // pred_region
    _
  $region13: #{transformer_forward.12} parent=0 // pred_fallthru
    _
  // Predicated region
  $region14: #{transformer_forward.12} parent=0 // pred_check
    _
  $region15: #{transformer_forward.12} parent=0 // pred_check_branch
    %16 = sbr.rel (0) target = $region17
  $region16: #{transformer_forward.12} parent=0 // pred_region
    _
  $region17: #{transformer_forward.12} parent=0 // pred_fallthru
    _
  %v17 = vld [vmem:[%s0] sm:$0xff]
  %v18 = vld [vmem:[%s0 + $0x8] sm:$0xff]
  %v19 = vld [vmem:[%s1] sm:$0xff]
  %v20 = vld [vmem:[%s1 + $0x8] sm:$0xff]
  %v21 = vld [vmem:[%s1 + $0x10] sm:$0xff]
  %v22 = vld [vmem:[%s1 + $0x18] sm:$0xff]
  %v23 = vld [vmem:[%s2] sm:$0x1]
  %v25 = vlaneseq
  %v26 = vshrl.u32 %v25, 7
  %v27 = vsub.s32 0, %v26
  %v28 = vrot.slane %v23, %v27
  %vm30 = vcmask 261120
  %v32 = vsel %vm30, %v17, 0
  %v35 = vsel %vm30, %v18, 0
  %37 = vmatprep.subr.mxu0 0.0
  %38 = vmatpush1.msra.mxu0 %v19
  %39 = vmatprep.subr.mxu0 0.0
  %40 = vmatpush1.msra.mxu0 %v20
  %41 = vmatprep.subr.mxu0 0.0
  %42 = vmatpush1.msra.mxu0 %v21
  %43 = vmatprep.subr.mxu0 0.0
  %44 = vmatpush1.msra.mxu0 %v22
  %45 = vmatprep.subr.mxu0 0.0
  %46 = vmatpush1.msra.mxu0 0.0
  %47 = vmatprep.subr.mxu0 0.0
  %48 = vmatpush1.msra.mxu0 0.0
  %49 = vmatprep.subr.mxu0 0.0
  %50 = vmatpush1.msra.mxu0 0.0
  %51 = vmatprep.subr.mxu0 0.0
  %52 = vmatpush1.msra.mxu0 0.0
  %53 = vmatprep.subr.mxu0 0.0
  %54 = vmatpush1.msra.mxu0 0.0
  %55 = vmatprep.subr.mxu0 0.0
  %56 = vmatpush1.msra.mxu0 0.0
  %57 = vmatprep.subr.mxu0 0.0
  %58 = vmatpush1.msra.mxu0 0.0
  %59 = vmatprep.subr.mxu0 0.0
  %60 = vmatpush1.msra.mxu0 0.0
  %61 = vmatprep.subr.mxu0 0.0
  %62 = vmatpush1.msra.mxu0 0.0
  %63 = vmatprep.subr.mxu0 0.0
  %64 = vmatpush1.msra.mxu0 0.0
  %65 = vmatprep.subr.mxu0 0.0
  %66 = vmatpush1.msra.mxu0 0.0
  %67 = vmatprep.subr.mxu0 0.0
  %68 = vmatpush1.msra.mxu0 0.0
  %69 = vmatprep.subr.mxu0 0.0
  %70 = vmatpush1.msra.mxu0 0.0
  %71 = vmatprep.subr.mxu0 0.0
  %72 = vmatpush1.msra.mxu0 0.0
  %73 = vmatprep.subr.mxu0 0.0
  %74 = vmatpush1.msra.mxu0 0.0
  %75 = vmatprep.subr.mxu0 0.0
  %76 = vmatpush1.msra.mxu0 0.0
  %77 = vmatprep.subr.mxu0 0.0
  %78 = vmatpush1.msra.mxu0 0.0
  %79 = vmatprep.subr.mxu0 0.0
  %80 = vmatpush1.msra.mxu0 0.0
  %81 = vmatprep.subr.mxu0 0.0
  %82 = vmatpush1.msra.mxu0 0.0
  %83 = vmatprep.subr.mxu0 0.0
  %84 = vmatpush1.msra.mxu0 0.0
  %85 = vmatprep.subr.mxu0 0.0
  %86 = vmatpush1.msra.mxu0 0.0
  %87 = vmatprep.subr.mxu0 0.0
  %88 = vmatpush1.msra.mxu0 0.0
  %89 = vmatprep.subr.mxu0 0.0
  %90 = vmatpush1.msra.mxu0 0.0
  %91 = vmatprep.subr.mxu0 0.0
  %92 = vmatpush1.msra.mxu0 0.0
  %93 = vmatprep.subr.mxu0 0.0
  %94 = vmatpush1.msra.mxu0 0.0
  %95 = vmatprep.subr.mxu0 0.0
  %96 = vmatpush1.msra.mxu0 0.0
  %97 = vmatprep.subr.mxu0 0.0
  %98 = vmatpush1.msra.mxu0 0.0
  %99 = vmatprep.subr.mxu0 0.0
  %100 = vmatpush1.msra.mxu0 0.0
  %101 = vmatprep.mubr.f32.mxu0 0.0
  %102 = vmatmul.mubr.f32.gmra.mrb[0].mxu0 %v32
  %v103 = vpop.f32.mrb[0].mxu0
  %v104 = vadd.f32 %v28, %v103
  %v105 = vpop.f32.mrb[0].mxu0
  %106 = vmatprep.mubr.f32.mxu0 0.0
  %107 = vmatmul.mubr.f32.gmra.mrb[0].mxu0 %v35
  %v108 = vpop.f32.mrb[0].mxu0
  %v109 = vadd.f32 %v28, %v108
  %v110 = vpop.f32.mrb[0].mxu0
  %111 = vdwg.mxu0
  %v112 = vld [vmem:[%s3] sm:$0xff]
  %v113 = vld [vmem:[%s3 + $0x8] sm:$0xff]
  %v114 = vadd.f32 %v104, %v112
  %v115 = vadd.f32 %v109, %v113
  %116 = vst.msk [vmem:[%s4] sm:$0xff] %vm30, %v114
  %117 = vst.msk [vmem:[%s4 + $0x8] sm:$0xff] %vm30, %v115
  // Predicated region
  $region18: #{transformer_forward.12} parent=0 // pred_check
    _
  $region19: #{transformer_forward.12} parent=0 // pred_check_branch
    %119 = sbr.rel (0) target = $region21
  $region20: #{transformer_forward.12} parent=0 // pred_region
    _
  $region21: #{transformer_forward.12} parent=0 // pred_fallthru
    _
  // Predicated region
  $region22: #{transformer_forward.12} parent=0 // pred_check
    _
  $region23: #{transformer_forward.12} parent=0 // pred_check_branch
    %121 = sbr.rel (0) target = $region25
  $region24: #{transformer_forward.12} parent=0 // pred_region
    _
  $region25: #{transformer_forward.12} parent=0 // pred_fallthru
    _

// kernel: transformer_forward.14
$region0: #{transformer_forward.14}
  #allocation0 [shape = 'u32[]', space=smem, size = 0x4, offset = 0x4, fixed_abs, tag = 'smem constant byte address 0x4 - core index']
  #allocation1 [shape = 'u32[144,128]{1,0:T(1,128)}', space=vmem, size = 0x12000, scoped, tag = 'internal scratch']
  %s0 = inlined_call_operand.vmem [shape: f32[16,64], index: 0, kind: input, shape index: {}]
  %s1 = inlined_call_operand.vmem [shape: f32[64,32], index: 1, kind: input, shape index: {}]
  %s2 = inlined_call_operand.vmem [shape: f32[1,32], index: 2, kind: input, shape index: {}]
  %s3 = inlined_call_operand.vmem [shape: f32[16,32], index: 3, kind: input, shape index: {}]
  %s4 = inlined_call_operand.vmem [shape: f32[16,32], index: 4, kind: output, shape index: {}]
  %s5 = sld [smem:[#allocation0]]
  $region26: #{transformer_forward.14} parent=0
    _
  %s7 = ssub.s32 1, %s5
  %s8 = scalar_select 0, %s7, %s5
  // Predicated region
  $region2: #{transformer_forward.14} parent=0 // pred_check
    _
  $region3: #{transformer_forward.14} parent=0 // pred_check_branch
    %10 = sbr.rel (0) target = $region5
  $region4: #{transformer_forward.14} parent=0 // pred_region
    _
  $region5: #{transformer_forward.14} parent=0 // pred_fallthru
    _
  // Predicated region
  $region6: #{transformer_forward.14} parent=0 // pred_check
    _
  $region7: #{transformer_forward.14} parent=0 // pred_check_branch
    %12 = sbr.rel (0) target = $region9
  $region8: #{transformer_forward.14} parent=0 // pred_region
    _
  $region9: #{transformer_forward.14} parent=0 // pred_fallthru
    _
  // Predicated region
  $region10: #{transformer_forward.14} parent=0 // pred_check
    _
  $region11: #{transformer_forward.14} parent=0 // pred_check_branch
    %14 = sbr.rel (0) target = $region13
  $region12: #{transformer_forward.14} parent=0 // pred_region
    _
  $region13: #{transformer_forward.14} parent=0 // pred_fallthru
    _
  // Predicated region
  $region14: #{transformer_forward.14} parent=0 // pred_check
    _
  $region15: #{transformer_forward.14} parent=0 // pred_check_branch
    %16 = sbr.rel (0) target = $region17
  $region16: #{transformer_forward.14} parent=0 // pred_region
    _
  $region17: #{transformer_forward.14} parent=0 // pred_fallthru
    _
  %v17 = vld [vmem:[%s0] sm:$0xff]
  %v18 = vld [vmem:[%s0 + $0x8] sm:$0xff]
  %v19 = vld [vmem:[%s1] sm:$0xff]
  %v20 = vld [vmem:[%s1 + $0x8] sm:$0xff]
  %v21 = vld [vmem:[%s1 + $0x10] sm:$0xff]
  %v22 = vld [vmem:[%s1 + $0x18] sm:$0xff]
  %v23 = vld [vmem:[%s1 + $0x20] sm:$0xff]
  %v24 = vld [vmem:[%s1 + $0x28] sm:$0xff]
  %v25 = vld [vmem:[%s1 + $0x30] sm:$0xff]
  %v26 = vld [vmem:[%s1 + $0x38] sm:$0xff]
  %v27 = vld [vmem:[%s2] sm:$0x1]
  %v29 = vlaneseq
  %v30 = vshrl.u32 %v29, 7
  %v31 = vsub.s32 0, %v30
  %v32 = vrot.slane %v27, %v31
  %vm34 = vcmask 523264
  %v36 = vsel %vm34, %v17, 0
  %v39 = vsel %vm34, %v18, 0
  %41 = vmatprep.subr.mxu0 0.0
  %42 = vmatpush1.msra.mxu0 %v19
  %43 = vmatprep.subr.mxu0 0.0
  %44 = vmatpush1.msra.mxu0 %v20
  %45 = vmatprep.subr.mxu0 0.0
  %46 = vmatpush1.msra.mxu0 %v21
  %47 = vmatprep.subr.mxu0 0.0
  %48 = vmatpush1.msra.mxu0 %v22
  %49 = vmatprep.subr.mxu0 0.0
  %50 = vmatpush1.msra.mxu0 %v23
  %51 = vmatprep.subr.mxu0 0.0
  %52 = vmatpush1.msra.mxu0 %v24
  %53 = vmatprep.subr.mxu0 0.0
  %54 = vmatpush1.msra.mxu0 %v25
  %55 = vmatprep.subr.mxu0 0.0
  %56 = vmatpush1.msra.mxu0 %v26
  %57 = vmatprep.subr.mxu0 0.0
  %58 = vmatpush1.msra.mxu0 0.0
  %59 = vmatprep.subr.mxu0 0.0
  %60 = vmatpush1.msra.mxu0 0.0
  %61 = vmatprep.subr.mxu0 0.0
  %62 = vmatpush1.msra.mxu0 0.0
  %63 = vmatprep.subr.mxu0 0.0
  %64 = vmatpush1.msra.mxu0 0.0
  %65 = vmatprep.subr.mxu0 0.0
  %66 = vmatpush1.msra.mxu0 0.0
  %67 = vmatprep.subr.mxu0 0.0
  %68 = vmatpush1.msra.mxu0 0.0
  %69 = vmatprep.subr.mxu0 0.0
  %70 = vmatpush1.msra.mxu0 0.0
  %71 = vmatprep.subr.mxu0 0.0
  %72 = vmatpush1.msra.mxu0 0.0
  %73 = vmatprep.subr.mxu0 0.0
  %74 = vmatpush1.msra.mxu0 0.0
  %75 = vmatprep.subr.mxu0 0.0
  %76 = vmatpush1.msra.mxu0 0.0
  %77 = vmatprep.subr.mxu0 0.0
  %78 = vmatpush1.msra.mxu0 0.0
  %79 = vmatprep.subr.mxu0 0.0
  %80 = vmatpush1.msra.mxu0 0.0
  %81 = vmatprep.subr.mxu0 0.0
  %82 = vmatpush1.msra.mxu0 0.0
  %83 = vmatprep.subr.mxu0 0.0
  %84 = vmatpush1.msra.mxu0 0.0
  %85 = vmatprep.subr.mxu0 0.0
  %86 = vmatpush1.msra.mxu0 0.0
  %87 = vmatprep.subr.mxu0 0.0
  %88 = vmatpush1.msra.mxu0 0.0
  %89 = vmatprep.subr.mxu0 0.0
  %90 = vmatpush1.msra.mxu0 0.0
  %91 = vmatprep.subr.mxu0 0.0
  %92 = vmatpush1.msra.mxu0 0.0
  %93 = vmatprep.subr.mxu0 0.0
  %94 = vmatpush1.msra.mxu0 0.0
  %95 = vmatprep.subr.mxu0 0.0
  %96 = vmatpush1.msra.mxu0 0.0
  %97 = vmatprep.subr.mxu0 0.0
  %98 = vmatpush1.msra.mxu0 0.0
  %99 = vmatprep.subr.mxu0 0.0
  %100 = vmatpush1.msra.mxu0 0.0
  %101 = vmatprep.subr.mxu0 0.0
  %102 = vmatpush1.msra.mxu0 0.0
  %103 = vmatprep.subr.mxu0 0.0
  %104 = vmatpush1.msra.mxu0 0.0
  %105 = vmatprep.mubr.f32.mxu0 0.0
  %106 = vmatmul.mubr.f32.gmra.mrb[0].mxu0 %v36
  %v107 = vpop.f32.mrb[0].mxu0
  %v108 = vadd.f32 %v32, %v107
  %v109 = vpop.f32.mrb[0].mxu0
  %110 = vmatprep.mubr.f32.mxu0 0.0
  %111 = vmatmul.mubr.f32.gmra.mrb[0].mxu0 %v39
  %v112 = vpop.f32.mrb[0].mxu0
  %v113 = vadd.f32 %v32, %v112
  %v114 = vpop.f32.mrb[0].mxu0
  %115 = vdwg.mxu0
  %v116 = vld [vmem:[%s3] sm:$0xff]
  %v117 = vld [vmem:[%s3 + $0x8] sm:$0xff]
  %v118 = vadd.f32 %v108, %v116
  %v119 = vadd.f32 %v113, %v117
  %vm120 = vcmask 261120
  %121 = vst.msk [vmem:[%s4] sm:$0xff] %vm120, %v118
  %122 = vst.msk [vmem:[%s4 + $0x8] sm:$0xff] %vm120, %v119
  // Predicated region
  $region18: #{transformer_forward.14} parent=0 // pred_check
    _
  $region19: #{transformer_forward.14} parent=0 // pred_check_branch
    %124 = sbr.rel (0) target = $region21
  $region20: #{transformer_forward.14} parent=0 // pred_region
    _
  $region21: #{transformer_forward.14} parent=0 // pred_fallthru
    _
  // Predicated region
  $region22: #{transformer_forward.14} parent=0 // pred_check
    _
  $region23: #{transformer_forward.14} parent=0 // pred_check_branch
    %126 = sbr.rel (0) target = $region25
  $region24: #{transformer_forward.14} parent=0 // pred_region
    _
  $region25: #{transformer_forward.14} parent=0 // pred_fallthru
    _

</llo_original>
